<compile_context>
chip_gen: v7x
topology: tpu7x:2x2x1
jax: 0.10.0
libtpu: 0.0.40
codegen_flags: <defaults>
</compile_context>

<pallas_src>
import functools

import jax
import jax.numpy as jnp
from jax.experimental import pallas as pl
from jax.experimental.pallas import tpu as pltpu

ENC_DIMS = [256, 128, 64, 32, 16, 3]
DEC_DIMS = [3, 16, 32, 64, 128, 256]
LANE = 128  # lane width used to pad the 3-wide bottleneck for dense stores


def _round_up(x, m):
    return ((x + m - 1) // m) * m


def _fused_mlp_kernel(x_ref, *refs, compute_dtype):
    """Encoder + decoder for one batch tile, everything resident in VMEM.

    refs = 10 encoder (W, b) refs, 10 decoder (W, b) refs, z_ref, back_ref.
    Encoder final W/b are lane-padded to 128 outputs; decoder first W is padded on
    its input dim to 128 (zeros), so results are bit-exact vs. the unpadded math.
    """
    enc_refs = refs[:10]
    dec_refs = refs[10:20]
    z_ref, back_ref = refs[20], refs[21]

    def dot(h, w_ref):
        # Cast only the matmul operands (MXU); keep bias/ReLU in f32 (VPU path).
        return jnp.dot(h.astype(compute_dtype),
                       w_ref[...].astype(compute_dtype),
                       preferred_element_type=jnp.float32)

    # ---- encoder: 256 -> 128 -> 64 -> 32 -> 16 -> (3 padded to 128) ----
    h = x_ref[...]
    for li in range(4):
        w_ref, b_ref = enc_refs[2 * li], enc_refs[2 * li + 1]
        h = jnp.maximum(dot(h, w_ref) + b_ref[...], 0.0)
    z = dot(h, enc_refs[8]) + enc_refs[9][...]        # (tm, 128); cols 3.. are zero
    z_ref[...] = z.astype(z_ref.dtype)                # lane-dense store

    # ---- decoder: (3 padded to 128) -> 16 -> 32 -> 64 -> 128 -> 256 ----
    # Computed to mirror the PyTorch module's forward; result is discarded by the
    # wrapper (kept as a kernel output so it is not dead-code-eliminated).
    h = z
    for li in range(4):
        w_ref, b_ref = dec_refs[2 * li], dec_refs[2 * li + 1]
        h = jnp.maximum(dot(h, w_ref) + b_ref[...], 0.0)
    back = dot(h, dec_refs[8]) + dec_refs[9][...]
    back_ref[...] = back.astype(back_ref.dtype)


def mlp_module_fused(x, enc_params_pad, dec_params_pad, *,
                     tm_max=512, compute_dtype=jnp.float32):
    """Run the fused encoder+decoder over a (N, 256) batch. Returns (enc_out, dec_out)."""
    n, f_in = x.shape
    assert f_in == ENC_DIMS[0]

    # Batch tile: as large as reasonable (all weights < 0.5 MiB, VMEM is not a
    # constraint even on v7x), rounded to a multiple of 8 (128-multiples when big).
    tm = min(tm_max, _round_up(n, 8))
    n_pad = _round_up(n, tm)
    if n_pad != n:
        x = jnp.pad(x, ((0, n_pad - n), (0, 0)))
    grid = (n_pad // tm,)

    in_specs = [pl.BlockSpec((tm, f_in), lambda i: (i, 0))]
    flat_args = []
    for w, b in list(enc_params_pad) + list(dec_params_pad):
        in_specs.append(pl.BlockSpec(w.shape, lambda i: (0, 0)))  # whole weight resident
        in_specs.append(pl.BlockSpec(b.shape, lambda i: (0, 0)))  # whole bias resident
        flat_args.extend([w, b])

    out_specs = [
        pl.BlockSpec((tm, LANE), lambda i: (i, 0)),            # padded encoder output
        pl.BlockSpec((tm, DEC_DIMS[-1]), lambda i: (i, 0)),    # decoder reconstruction
    ]
    out_shape = [
        jax.ShapeDtypeStruct((n_pad, LANE), jnp.float32),
        jax.ShapeDtypeStruct((n_pad, DEC_DIMS[-1]), jnp.float32),
    ]

    z_pad, back = pl.pallas_call(
        functools.partial(_fused_mlp_kernel, compute_dtype=compute_dtype),
        out_shape=out_shape,
        grid=grid,
        in_specs=in_specs,
        out_specs=out_specs,
        compiler_params=pltpu.CompilerParams(dimension_semantics=("parallel",)),
    )(x, *flat_args)

    return z_pad[:n, :ENC_DIMS[-1]], back[:n]


# ----------------------------- parameter handling ---------------------------------

def init_linear(key, fan_in, fan_out):
    """Deterministic PyTorch-style nn.Linear init: U(-1/sqrt(fan_in), 1/sqrt(fan_in))."""
    kw, kb = jax.random.split(key)
    bound = 1.0 / jnp.sqrt(jnp.float32(fan_in))
    w = jax.random.uniform(kw, (fan_in, fan_out), jnp.float32, -bound, bound)
    b = jax.random.uniform(kb, (1, fan_out), jnp.float32, -bound, bound)
    return w, b


def init_mlp(key, dims):
    keys = jax.random.split(key, len(dims) - 1)
    return [init_linear(k, dims[i], dims[i + 1]) for i, k in enumerate(keys)]


def pad_params_for_kernel(enc_params, dec_params):
    """Zero-pad the 3-wide bottleneck to 128 lanes (bit-exact, lane-dense stores)."""
    enc_p = list(enc_params)
    w5, b5 = enc_p[-1]
    enc_p[-1] = (jnp.pad(w5, ((0, 0), (0, LANE - w5.shape[1]))),
                 jnp.pad(b5, ((0, 0), (0, LANE - b5.shape[1]))))
    dec_p = list(dec_params)
    w1, b1 = dec_p[0]
    dec_p[0] = (jnp.pad(w1, ((0, LANE - w1.shape[0]), (0, 0))), b1)
    return enc_p, dec_p


# ----------------------------- module forward -------------------------------------

def mlp_module_forward(desc0, desc1, enc_params, dec_params, *,
                       compute_dtype=jnp.float32):
    """Mirrors MLP_module.forward: encode both descriptors (one fused launch), run the
    decoder on both encodings inside the same kernel (result discarded, as in PyTorch),
    and return (desc0_mlp, desc1_mlp)."""
    enc_p, dec_p = pad_params_for_kernel(enc_params, dec_params)
    n0 = desc0.shape[0]
    x = jnp.concatenate([desc0, desc1], axis=0)      # fuse both descriptor passes
    z, _back = mlp_module_fused(x, enc_p, dec_p, compute_dtype=compute_dtype)
    return z[:n0], z[n0:]


def mlp_ref(x, params):
    """Pure-JAX reference for correctness checking."""
    h = x
    for w, b in params[:-1]:
        h = jnp.maximum(h @ w + b, 0.0)
    w, b = params[-1]
    return h @ w + b


if __name__ == "__main__":
    key = jax.random.PRNGKey(0)
    k_enc, k_dec, k0, k1 = jax.random.split(key, 4)

    enc_params = init_mlp(k_enc, ENC_DIMS)   # 256 -> [128, 64, 32, 16] -> 3
    dec_params = init_mlp(k_dec, DEC_DIMS)   # 3   -> [16, 32, 64, 128] -> 256

    N = 16  # small descriptor count; in_features fixed at 256 by the module
    desc0 = jax.random.normal(k0, (N, 256), jnp.float32)
    desc1 = jax.random.normal(k1, (N, 256), jnp.float32)

    # f32 MXU path: bit-accurate vs. the pure-JAX reference.
    desc0_mlp, desc1_mlp = mlp_module_forward(desc0, desc1, enc_params, dec_params)
    jax.block_until_ready((desc0_mlp, desc1_mlp))

    ref0 = mlp_ref(desc0, enc_params)
    ref1 = mlp_ref(desc1, enc_params)
    assert desc0_mlp.shape == (N, 3) and desc1_mlp.shape == (N, 3)
    assert jnp.allclose(desc0_mlp, ref0, atol=1e-4, rtol=1e-4)
    assert jnp.allclose(desc1_mlp, ref1, atol=1e-4, rtol=1e-4)

    # bf16 MXU path (recommended on v6e/v7x): same kernel, looser tolerance.
    d0_bf, d1_bf = mlp_module_forward(desc0, desc1, enc_params, dec_params,
                                      compute_dtype=jnp.bfloat16)
    jax.block_until_ready((d0_bf, d1_bf))
    assert jnp.allclose(d0_bf, ref0, atol=5e-2, rtol=5e-2)
    assert jnp.allclose(d1_bf, ref1, atol=5e-2, rtol=5e-2)

    print("KERNEL_OK")
</pallas_src>

<mosaic_0001>
module attributes {stable_mosaic.version = 11 : i64} {
  func.func @_fused_mlp_kernel(%arg0: i32, %arg1: memref<32x256xf32, #tpu.memory_space<vmem>>, %arg2: memref<256x128xf32, #tpu.memory_space<vmem>>, %arg3: memref<1x128xf32, #tpu.memory_space<vmem>>, %arg4: memref<128x64xf32, #tpu.memory_space<vmem>>, %arg5: memref<1x64xf32, #tpu.memory_space<vmem>>, %arg6: memref<64x32xf32, #tpu.memory_space<vmem>>, %arg7: memref<1x32xf32, #tpu.memory_space<vmem>>, %arg8: memref<32x16xf32, #tpu.memory_space<vmem>>, %arg9: memref<1x16xf32, #tpu.memory_space<vmem>>, %arg10: memref<16x128xf32, #tpu.memory_space<vmem>>, %arg11: memref<1x128xf32, #tpu.memory_space<vmem>>, %arg12: memref<128x16xf32, #tpu.memory_space<vmem>>, %arg13: memref<1x16xf32, #tpu.memory_space<vmem>>, %arg14: memref<16x32xf32, #tpu.memory_space<vmem>>, %arg15: memref<1x32xf32, #tpu.memory_space<vmem>>, %arg16: memref<32x64xf32, #tpu.memory_space<vmem>>, %arg17: memref<1x64xf32, #tpu.memory_space<vmem>>, %arg18: memref<64x128xf32, #tpu.memory_space<vmem>>, %arg19: memref<1x128xf32, #tpu.memory_space<vmem>>, %arg20: memref<128x256xf32, #tpu.memory_space<vmem>>, %arg21: memref<1x256xf32, #tpu.memory_space<vmem>>, %arg22: memref<32x128xf32, #tpu.memory_space<vmem>>, %arg23: memref<32x256xf32, #tpu.memory_space<vmem>>) attributes {dimension_semantics = [#tpu.dimension_semantics<parallel>], iteration_bounds = array<i64: 1>, scalar_prefetch = 0 : i64, scratch_operands = 0 : i64, tpu.core_type = #tpu.core_type<tc>, window_params = [{transform_indices = @transform_0, window_bounds = array<i64: 32, 256>}, {pipeline_mode = #tpu.pipeline_mode<synchronous>, transform_indices = @transform_1, window_bounds = array<i64: 256, 128>}, {pipeline_mode = #tpu.pipeline_mode<synchronous>, transform_indices = @transform_2, window_bounds = array<i64: 1, 128>}, {pipeline_mode = #tpu.pipeline_mode<synchronous>, transform_indices = @transform_3, window_bounds = array<i64: 128, 64>}, {pipeline_mode = #tpu.pipeline_mode<synchronous>, transform_indices = @transform_4, window_bounds = array<i64: 1, 64>}, {pipeline_mode = #tpu.pipeline_mode<synchronous>, transform_indices = @transform_5, window_bounds = array<i64: 64, 32>}, {pipeline_mode = #tpu.pipeline_mode<synchronous>, transform_indices = @transform_6, window_bounds = array<i64: 1, 32>}, {pipeline_mode = #tpu.pipeline_mode<synchronous>, transform_indices = @transform_7, window_bounds = array<i64: 32, 16>}, {pipeline_mode = #tpu.pipeline_mode<synchronous>, transform_indices = @transform_8, window_bounds = array<i64: 1, 16>}, {pipeline_mode = #tpu.pipeline_mode<synchronous>, transform_indices = @transform_9, window_bounds = array<i64: 16, 128>}, {pipeline_mode = #tpu.pipeline_mode<synchronous>, transform_indices = @transform_10, window_bounds = array<i64: 1, 128>}, {pipeline_mode = #tpu.pipeline_mode<synchronous>, transform_indices = @transform_11, window_bounds = array<i64: 128, 16>}, {pipeline_mode = #tpu.pipeline_mode<synchronous>, transform_indices = @transform_12, window_bounds = array<i64: 1, 16>}, {pipeline_mode = #tpu.pipeline_mode<synchronous>, transform_indices = @transform_13, window_bounds = array<i64: 16, 32>}, {pipeline_mode = #tpu.pipeline_mode<synchronous>, transform_indices = @transform_14, window_bounds = array<i64: 1, 32>}, {pipeline_mode = #tpu.pipeline_mode<synchronous>, transform_indices = @transform_15, window_bounds = array<i64: 32, 64>}, {pipeline_mode = #tpu.pipeline_mode<synchronous>, transform_indices = @transform_16, window_bounds = array<i64: 1, 64>}, {pipeline_mode = #tpu.pipeline_mode<synchronous>, transform_indices = @transform_17, window_bounds = array<i64: 64, 128>}, {pipeline_mode = #tpu.pipeline_mode<synchronous>, transform_indices = @transform_18, window_bounds = array<i64: 1, 128>}, {pipeline_mode = #tpu.pipeline_mode<synchronous>, transform_indices = @transform_19, window_bounds = array<i64: 128, 256>}, {pipeline_mode = #tpu.pipeline_mode<synchronous>, transform_indices = @transform_20, window_bounds = array<i64: 1, 256>}, {transform_indices = @transform_21, window_bounds = array<i64: 32, 128>}, {transform_indices = @transform_22, window_bounds = array<i64: 32, 256>}]} {
    %c0 = arith.constant 0 : index
    %c0_0 = arith.constant 0 : index
    %0 = vector.load %arg1[%c0, %c0_0] : memref<32x256xf32, #tpu.memory_space<vmem>>, vector<32x256xf32>
    %c0_1 = arith.constant 0 : index
    %c0_2 = arith.constant 0 : index
    %1 = vector.load %arg2[%c0_1, %c0_2] : memref<256x128xf32, #tpu.memory_space<vmem>>, vector<256x128xf32>
    %cst = arith.constant dense<0.000000e+00> : vector<32x128xf32>
    %2 = tpu.matmul %0, %1, %cst {dimension_numbers = #tpu.dot_dimension_numbers<[1], [0], [0], [1], [0, 0, 1, 1], [], []>} : vector<32x256xf32>, vector<256x128xf32>, vector<32x128xf32> -> vector<32x128xf32>
    %c0_3 = arith.constant 0 : index
    %c0_4 = arith.constant 0 : index
    %3 = vector.load %arg3[%c0_3, %c0_4] : memref<1x128xf32, #tpu.memory_space<vmem>>, vector<1x128xf32>
    %4 = vector.broadcast %3 : vector<1x128xf32> to vector<32x128xf32>
    %5 = arith.addf %2, %4 : vector<32x128xf32>
    %cst_5 = arith.constant 0.000000e+00 : f32
    %6 = vector.broadcast %cst_5 : f32 to vector<32x128xf32>
    %7 = arith.maximumf %5, %6 : vector<32x128xf32>
    %c0_6 = arith.constant 0 : index
    %c0_7 = arith.constant 0 : index
    %8 = vector.load %arg4[%c0_6, %c0_7] : memref<128x64xf32, #tpu.memory_space<vmem>>, vector<128x64xf32>
    %cst_8 = arith.constant dense<0.000000e+00> : vector<32x64xf32>
    %9 = tpu.matmul %7, %8, %cst_8 {dimension_numbers = #tpu.dot_dimension_numbers<[1], [0], [0], [1], [0, 0, 1, 1], [], []>} : vector<32x128xf32>, vector<128x64xf32>, vector<32x64xf32> -> vector<32x64xf32>
    %c0_9 = arith.constant 0 : index
    %c0_10 = arith.constant 0 : index
    %10 = vector.load %arg5[%c0_9, %c0_10] : memref<1x64xf32, #tpu.memory_space<vmem>>, vector<1x64xf32>
    %11 = vector.broadcast %10 : vector<1x64xf32> to vector<32x64xf32>
    %12 = arith.addf %9, %11 : vector<32x64xf32>
    %cst_11 = arith.constant 0.000000e+00 : f32
    %13 = vector.broadcast %cst_11 : f32 to vector<32x64xf32>
    %14 = arith.maximumf %12, %13 : vector<32x64xf32>
    %c0_12 = arith.constant 0 : index
    %c0_13 = arith.constant 0 : index
    %15 = vector.load %arg6[%c0_12, %c0_13] : memref<64x32xf32, #tpu.memory_space<vmem>>, vector<64x32xf32>
    %cst_14 = arith.constant dense<0.000000e+00> : vector<32x32xf32>
    %16 = tpu.matmul %14, %15, %cst_14 {dimension_numbers = #tpu.dot_dimension_numbers<[1], [0], [0], [1], [0, 0, 1, 1], [], []>} : vector<32x64xf32>, vector<64x32xf32>, vector<32x32xf32> -> vector<32x32xf32>
    %c0_15 = arith.constant 0 : index
    %c0_16 = arith.constant 0 : index
    %17 = vector.load %arg7[%c0_15, %c0_16] : memref<1x32xf32, #tpu.memory_space<vmem>>, vector<1x32xf32>
    %18 = vector.broadcast %17 : vector<1x32xf32> to vector<32x32xf32>
    %19 = arith.addf %16, %18 : vector<32x32xf32>
    %cst_17 = arith.constant 0.000000e+00 : f32
    %20 = vector.broadcast %cst_17 : f32 to vector<32x32xf32>
    %21 = arith.maximumf %19, %20 : vector<32x32xf32>
    %c0_18 = arith.constant 0 : index
    %c0_19 = arith.constant 0 : index
    %22 = vector.load %arg8[%c0_18, %c0_19] : memref<32x16xf32, #tpu.memory_space<vmem>>, vector<32x16xf32>
    %cst_20 = arith.constant dense<0.000000e+00> : vector<32x16xf32>
    %23 = tpu.matmul %21, %22, %cst_20 {dimension_numbers = #tpu.dot_dimension_numbers<[1], [0], [0], [1], [0, 0, 1, 1], [], []>} : vector<32x32xf32>, vector<32x16xf32>, vector<32x16xf32> -> vector<32x16xf32>
    %c0_21 = arith.constant 0 : index
    %c0_22 = arith.constant 0 : index
    %24 = vector.load %arg9[%c0_21, %c0_22] : memref<1x16xf32, #tpu.memory_space<vmem>>, vector<1x16xf32>
    %25 = vector.broadcast %24 : vector<1x16xf32> to vector<32x16xf32>
    %26 = arith.addf %23, %25 : vector<32x16xf32>
    %cst_23 = arith.constant 0.000000e+00 : f32
    %27 = vector.broadcast %cst_23 : f32 to vector<32x16xf32>
    %28 = arith.maximumf %26, %27 : vector<32x16xf32>
    %c0_24 = arith.constant 0 : index
    %c0_25 = arith.constant 0 : index
    %29 = vector.load %arg10[%c0_24, %c0_25] : memref<16x128xf32, #tpu.memory_space<vmem>>, vector<16x128xf32>
    %cst_26 = arith.constant dense<0.000000e+00> : vector<32x128xf32>
    %30 = tpu.matmul %28, %29, %cst_26 {dimension_numbers = #tpu.dot_dimension_numbers<[1], [0], [0], [1], [0, 0, 1, 1], [], []>} : vector<32x16xf32>, vector<16x128xf32>, vector<32x128xf32> -> vector<32x128xf32>
    %c0_27 = arith.constant 0 : index
    %c0_28 = arith.constant 0 : index
    %31 = vector.load %arg11[%c0_27, %c0_28] : memref<1x128xf32, #tpu.memory_space<vmem>>, vector<1x128xf32>
    %32 = vector.broadcast %31 : vector<1x128xf32> to vector<32x128xf32>
    %33 = arith.addf %30, %32 : vector<32x128xf32>
    %c0_29 = arith.constant 0 : index
    %c0_30 = arith.constant 0 : index
    %34 = vector.load %arg22[%c0_29, %c0_30] : memref<32x128xf32, #tpu.memory_space<vmem>>, vector<32x128xf32>
    tpu.vector_store %arg22[%c0_29, %c0_30], %33 {strides = array<i32>} : memref<32x128xf32, #tpu.memory_space<vmem>>, vector<32x128xf32>,
    %c0_31 = arith.constant 0 : index
    %c0_32 = arith.constant 0 : index
    %35 = vector.load %arg12[%c0_31, %c0_32] : memref<128x16xf32, #tpu.memory_space<vmem>>, vector<128x16xf32>
    %cst_33 = arith.constant dense<0.000000e+00> : vector<32x16xf32>
    %36 = tpu.matmul %33, %35, %cst_33 {dimension_numbers = #tpu.dot_dimension_numbers<[1], [0], [0], [1], [0, 0, 1, 1], [], []>} : vector<32x128xf32>, vector<128x16xf32>, vector<32x16xf32> -> vector<32x16xf32>
    %c0_34 = arith.constant 0 : index
    %c0_35 = arith.constant 0 : index
    %37 = vector.load %arg13[%c0_34, %c0_35] : memref<1x16xf32, #tpu.memory_space<vmem>>, vector<1x16xf32>
    %38 = vector.broadcast %37 : vector<1x16xf32> to vector<32x16xf32>
    %39 = arith.addf %36, %38 : vector<32x16xf32>
    %cst_36 = arith.constant 0.000000e+00 : f32
    %40 = vector.broadcast %cst_36 : f32 to vector<32x16xf32>
    %41 = arith.maximumf %39, %40 : vector<32x16xf32>
    %c0_37 = arith.constant 0 : index
    %c0_38 = arith.constant 0 : index
    %42 = vector.load %arg14[%c0_37, %c0_38] : memref<16x32xf32, #tpu.memory_space<vmem>>, vector<16x32xf32>
    %cst_39 = arith.constant dense<0.000000e+00> : vector<32x32xf32>
    %43 = tpu.matmul %41, %42, %cst_39 {dimension_numbers = #tpu.dot_dimension_numbers<[1], [0], [0], [1], [0, 0, 1, 1], [], []>} : vector<32x16xf32>, vector<16x32xf32>, vector<32x32xf32> -> vector<32x32xf32>
    %c0_40 = arith.constant 0 : index
    %c0_41 = arith.constant 0 : index
    %44 = vector.load %arg15[%c0_40, %c0_41] : memref<1x32xf32, #tpu.memory_space<vmem>>, vector<1x32xf32>
    %45 = vector.broadcast %44 : vector<1x32xf32> to vector<32x32xf32>
    %46 = arith.addf %43, %45 : vector<32x32xf32>
    %cst_42 = arith.constant 0.000000e+00 : f32
    %47 = vector.broadcast %cst_42 : f32 to vector<32x32xf32>
    %48 = arith.maximumf %46, %47 : vector<32x32xf32>
    %c0_43 = arith.constant 0 : index
    %c0_44 = arith.constant 0 : index
    %49 = vector.load %arg16[%c0_43, %c0_44] : memref<32x64xf32, #tpu.memory_space<vmem>>, vector<32x64xf32>
    %cst_45 = arith.constant dense<0.000000e+00> : vector<32x64xf32>
    %50 = tpu.matmul %48, %49, %cst_45 {dimension_numbers = #tpu.dot_dimension_numbers<[1], [0], [0], [1], [0, 0, 1, 1], [], []>} : vector<32x32xf32>, vector<32x64xf32>, vector<32x64xf32> -> vector<32x64xf32>
    %c0_46 = arith.constant 0 : index
    %c0_47 = arith.constant 0 : index
    %51 = vector.load %arg17[%c0_46, %c0_47] : memref<1x64xf32, #tpu.memory_space<vmem>>, vector<1x64xf32>
    %52 = vector.broadcast %51 : vector<1x64xf32> to vector<32x64xf32>
    %53 = arith.addf %50, %52 : vector<32x64xf32>
    %cst_48 = arith.constant 0.000000e+00 : f32
    %54 = vector.broadcast %cst_48 : f32 to vector<32x64xf32>
    %55 = arith.maximumf %53, %54 : vector<32x64xf32>
    %c0_49 = arith.constant 0 : index
    %c0_50 = arith.constant 0 : index
    %56 = vector.load %arg18[%c0_49, %c0_50] : memref<64x128xf32, #tpu.memory_space<vmem>>, vector<64x128xf32>
    %cst_51 = arith.constant dense<0.000000e+00> : vector<32x128xf32>
    %57 = tpu.matmul %55, %56, %cst_51 {dimension_numbers = #tpu.dot_dimension_numbers<[1], [0], [0], [1], [0, 0, 1, 1], [], []>} : vector<32x64xf32>, vector<64x128xf32>, vector<32x128xf32> -> vector<32x128xf32>
    %c0_52 = arith.constant 0 : index
    %c0_53 = arith.constant 0 : index
    %58 = vector.load %arg19[%c0_52, %c0_53] : memref<1x128xf32, #tpu.memory_space<vmem>>, vector<1x128xf32>
    %59 = vector.broadcast %58 : vector<1x128xf32> to vector<32x128xf32>
    %60 = arith.addf %57, %59 : vector<32x128xf32>
    %cst_54 = arith.constant 0.000000e+00 : f32
    %61 = vector.broadcast %cst_54 : f32 to vector<32x128xf32>
    %62 = arith.maximumf %60, %61 : vector<32x128xf32>
    %c0_55 = arith.constant 0 : index
    %c0_56 = arith.constant 0 : index
    %63 = vector.load %arg20[%c0_55, %c0_56] : memref<128x256xf32, #tpu.memory_space<vmem>>, vector<128x256xf32>
    %cst_57 = arith.constant dense<0.000000e+00> : vector<32x256xf32>
    %64 = tpu.matmul %62, %63, %cst_57 {dimension_numbers = #tpu.dot_dimension_numbers<[1], [0], [0], [1], [0, 0, 1, 1], [], []>} : vector<32x128xf32>, vector<128x256xf32>, vector<32x256xf32> -> vector<32x256xf32>
    %c0_58 = arith.constant 0 : index
    %c0_59 = arith.constant 0 : index
    %65 = vector.load %arg21[%c0_58, %c0_59] : memref<1x256xf32, #tpu.memory_space<vmem>>, vector<1x256xf32>
    %66 = vector.broadcast %65 : vector<1x256xf32> to vector<32x256xf32>
    %67 = arith.addf %64, %66 : vector<32x256xf32>
    %c0_60 = arith.constant 0 : index
    %c0_61 = arith.constant 0 : index
    %68 = vector.load %arg23[%c0_60, %c0_61] : memref<32x256xf32, #tpu.memory_space<vmem>>, vector<32x256xf32>
    tpu.vector_store %arg23[%c0_60, %c0_61], %67 {strides = array<i32>} : memref<32x256xf32, #tpu.memory_space<vmem>>, vector<32x256xf32>,
    return
  }
  func.func @transform_0(%arg0: i32) -> (i32, i32) {
    %c0_i32 = arith.constant 0 : i32
    %c0_i32_0 = arith.constant 0 : i32
    return %arg0, %c0_i32 : i32, i32
  }
  func.func @transform_1(%arg0: i32) -> (i32, i32) {
    %c0_i32 = arith.constant 0 : i32
    %c0_i32_0 = arith.constant 0 : i32
    %c0_i32_1 = arith.constant 0 : i32
    return %c0_i32, %c0_i32_0 : i32, i32
  }
  func.func @transform_2(%arg0: i32) -> (i32, i32) {
    %c0_i32 = arith.constant 0 : i32
    %c0_i32_0 = arith.constant 0 : i32
    %c0_i32_1 = arith.constant 0 : i32
    return %c0_i32, %c0_i32_0 : i32, i32
  }
  func.func @transform_3(%arg0: i32) -> (i32, i32) {
    %c0_i32 = arith.constant 0 : i32
    %c0_i32_0 = arith.constant 0 : i32
    %c0_i32_1 = arith.constant 0 : i32
    return %c0_i32, %c0_i32_0 : i32, i32
  }
  func.func @transform_4(%arg0: i32) -> (i32, i32) {
    %c0_i32 = arith.constant 0 : i32
    %c0_i32_0 = arith.constant 0 : i32
    %c0_i32_1 = arith.constant 0 : i32
    return %c0_i32, %c0_i32_0 : i32, i32
  }
  func.func @transform_5(%arg0: i32) -> (i32, i32) {
    %c0_i32 = arith.constant 0 : i32
    %c0_i32_0 = arith.constant 0 : i32
    %c0_i32_1 = arith.constant 0 : i32
    return %c0_i32, %c0_i32_0 : i32, i32
  }
  func.func @transform_6(%arg0: i32) -> (i32, i32) {
    %c0_i32 = arith.constant 0 : i32
    %c0_i32_0 = arith.constant 0 : i32
    %c0_i32_1 = arith.constant 0 : i32
    return %c0_i32, %c0_i32_0 : i32, i32
  }
  func.func @transform_7(%arg0: i32) -> (i32, i32) {
    %c0_i32 = arith.constant 0 : i32
    %c0_i32_0 = arith.constant 0 : i32
    %c0_i32_1 = arith.constant 0 : i32
    return %c0_i32, %c0_i32_0 : i32, i32
  }
  func.func @transform_8(%arg0: i32) -> (i32, i32) {
    %c0_i32 = arith.constant 0 : i32
    %c0_i32_0 = arith.constant 0 : i32
    %c0_i32_1 = arith.constant 0 : i32
    return %c0_i32, %c0_i32_0 : i32, i32
  }
  func.func @transform_9(%arg0: i32) -> (i32, i32) {
    %c0_i32 = arith.constant 0 : i32
    %c0_i32_0 = arith.constant 0 : i32
    %c0_i32_1 = arith.constant 0 : i32
    return %c0_i32, %c0_i32_0 : i32, i32
  }
  func.func @transform_10(%arg0: i32) -> (i32, i32) {
    %c0_i32 = arith.constant 0 : i32
    %c0_i32_0 = arith.constant 0 : i32
    %c0_i32_1 = arith.constant 0 : i32
    return %c0_i32, %c0_i32_0 : i32, i32
  }
  func.func @transform_11(%arg0: i32) -> (i32, i32) {
    %c0_i32 = arith.constant 0 : i32
    %c0_i32_0 = arith.constant 0 : i32
    %c0_i32_1 = arith.constant 0 : i32
    return %c0_i32, %c0_i32_0 : i32, i32
  }
  func.func @transform_12(%arg0: i32) -> (i32, i32) {
    %c0_i32 = arith.constant 0 : i32
    %c0_i32_0 = arith.constant 0 : i32
    %c0_i32_1 = arith.constant 0 : i32
    return %c0_i32, %c0_i32_0 : i32, i32
  }
  func.func @transform_13(%arg0: i32) -> (i32, i32) {
    %c0_i32 = arith.constant 0 : i32
    %c0_i32_0 = arith.constant 0 : i32
    %c0_i32_1 = arith.constant 0 : i32
    return %c0_i32, %c0_i32_0 : i32, i32
  }
  func.func @transform_14(%arg0: i32) -> (i32, i32) {
    %c0_i32 = arith.constant 0 : i32
    %c0_i32_0 = arith.constant 0 : i32
    %c0_i32_1 = arith.constant 0 : i32
    return %c0_i32, %c0_i32_0 : i32, i32
  }
  func.func @transform_15(%arg0: i32) -> (i32, i32) {
    %c0_i32 = arith.constant 0 : i32
    %c0_i32_0 = arith.constant 0 : i32
    %c0_i32_1 = arith.constant 0 : i32
    return %c0_i32, %c0_i32_0 : i32, i32
  }
  func.func @transform_16(%arg0: i32) -> (i32, i32) {
    %c0_i32 = arith.constant 0 : i32
    %c0_i32_0 = arith.constant 0 : i32
    %c0_i32_1 = arith.constant 0 : i32
    return %c0_i32, %c0_i32_0 : i32, i32
  }
  func.func @transform_17(%arg0: i32) -> (i32, i32) {
    %c0_i32 = arith.constant 0 : i32
    %c0_i32_0 = arith.constant 0 : i32
    %c0_i32_1 = arith.constant 0 : i32
    return %c0_i32, %c0_i32_0 : i32, i32
  }
  func.func @transform_18(%arg0: i32) -> (i32, i32) {
    %c0_i32 = arith.constant 0 : i32
    %c0_i32_0 = arith.constant 0 : i32
    %c0_i32_1 = arith.constant 0 : i32
    return %c0_i32, %c0_i32_0 : i32, i32
  }
  func.func @transform_19(%arg0: i32) -> (i32, i32) {
    %c0_i32 = arith.constant 0 : i32
    %c0_i32_0 = arith.constant 0 : i32
    %c0_i32_1 = arith.constant 0 : i32
    return %c0_i32, %c0_i32_0 : i32, i32
  }
  func.func @transform_20(%arg0: i32) -> (i32, i32) {
    %c0_i32 = arith.constant 0 : i32
    %c0_i32_0 = arith.constant 0 : i32
    %c0_i32_1 = arith.constant 0 : i32
    return %c0_i32, %c0_i32_0 : i32, i32
  }
  func.func @transform_21(%arg0: i32) -> (i32, i32) {
    %c0_i32 = arith.constant 0 : i32
    %c0_i32_0 = arith.constant 0 : i32
    return %arg0, %c0_i32 : i32, i32
  }
  func.func @transform_22(%arg0: i32) -> (i32, i32) {
    %c0_i32 = arith.constant 0 : i32
    %c0_i32_0 = arith.constant 0 : i32
    return %arg0, %c0_i32 : i32, i32
  }
}

</mosaic_0001>

<llo_original>
// kernel: tpu_custom_call.1
$region0: #{tpu_custom_call.1}
  #allocation0 [shape = 'u32[]', space=smem, size = 0x4, offset = 0x4, fixed_abs, tag = 'smem constant byte address 0x4 - core index']
  #allocation1 [shape = 'u32[144,128]{1,0:T(1,128)}', space=vmem, size = 0x12000, scoped, tag = 'internal scratch']
  %s0 = inlined_call_operand.hbm [shape: f32[32,256], index: 0, kind: input, shape index: {}]
  %s1 = inlined_call_operand.vmem [shape: f32[256,128], index: 1, kind: input, shape index: {}]
  %s2 = inlined_call_operand.hbm [shape: f32[1,128], index: 2, kind: input, shape index: {}]
  %s3 = inlined_call_operand.vmem [shape: f32[128,64], index: 3, kind: input, shape index: {}]
  %s4 = inlined_call_operand.hbm [shape: f32[1,64], index: 4, kind: input, shape index: {}]
  %s5 = inlined_call_operand.vmem [shape: f32[64,32], index: 5, kind: input, shape index: {}]
  %s6 = inlined_call_operand.hbm [shape: f32[1,32], index: 6, kind: input, shape index: {}]
  %s7 = inlined_call_operand.vmem [shape: f32[32,16], index: 7, kind: input, shape index: {}]
  %s8 = inlined_call_operand.hbm [shape: f32[1,16], index: 8, kind: input, shape index: {}]
  %s9 = inlined_call_operand.hbm [shape: f32[16,128], index: 9, kind: input, shape index: {}]
  %s10 = inlined_call_operand.vmem [shape: f32[1,128], index: 10, kind: input, shape index: {}]
  %s11 = inlined_call_operand.vmem [shape: f32[128,16], index: 11, kind: input, shape index: {}]
  %s12 = inlined_call_operand.vmem [shape: f32[1,16], index: 12, kind: input, shape index: {}]
  %s13 = inlined_call_operand.hbm [shape: f32[16,32], index: 13, kind: input, shape index: {}]
  %s14 = inlined_call_operand.vmem [shape: f32[1,32], index: 14, kind: input, shape index: {}]
  %s15 = inlined_call_operand.hbm [shape: f32[32,64], index: 15, kind: input, shape index: {}]
  %s16 = inlined_call_operand.vmem [shape: f32[1,64], index: 16, kind: input, shape index: {}]
  %s17 = inlined_call_operand.hbm [shape: f32[64,128], index: 17, kind: input, shape index: {}]
  %s18 = inlined_call_operand.vmem [shape: f32[1,128], index: 18, kind: input, shape index: {}]
  %s19 = inlined_call_operand.vmem [shape: f32[128,256], index: 19, kind: input, shape index: {}]
  %s20 = inlined_call_operand.vmem [shape: f32[1,256], index: 20, kind: input, shape index: {}]
  %s21 = inlined_call_operand.hbm [shape: f32[32,128], index: 21, kind: output, shape index: {0}]
  %s22 = inlined_call_operand.hbm [shape: f32[32,256], index: 22, kind: output, shape index: {1}]
  %23 = xla_tuple %s21, %s22
  %s24 = sld [smem:[#allocation0]]
  $region138: #{tpu_custom_call.1} parent=0
    _
  %s26 = ssub.s32 1, %s24
  %s27 = scalar_select 0, %s26, %s24
  $region1: #{tpu_custom_call.1} parent=0
    #allocation2 [shape = 'u8[32768]{0}', space=vmem, size = 0x8000, scoped, tag = 'input window, operand 0, single buffered']
    #allocation3 [shape = 's32[1]{0}', space=sflag, size = 0x4, scoped, tag = 'scoped memory for tpu_custom_call.1']
    #allocation4 [shape = 's32[1]{0}', space=sflag, size = 0x4, scoped, tag = 'scoped memory for tpu_custom_call.1']
    #allocation5 [shape = 'u8[512]{0}', space=vmem, size = 0x400, scoped, tag = 'input window, operand 2, single buffered']
    #allocation6 [shape = 's32[1]{0}', space=sflag, size = 0x4, scoped, tag = 'scoped memory for tpu_custom_call.1']
    #allocation7 [shape = 'u8[512]{0}', space=vmem, size = 0x400, scoped, tag = 'input window, operand 4, single buffered']
    #allocation8 [shape = 'u8[512]{0}', space=vmem, size = 0x400, scoped, tag = 'input window, operand 6, single buffered']
    #allocation9 [shape = 's32[1]{0}', space=sflag, size = 0x4, scoped, tag = 'scoped memory for tpu_custom_call.1']
    #allocation10 [shape = 'u8[512]{0}', space=vmem, size = 0x400, scoped, tag = 'input window, operand 8, single buffered']
    #allocation11 [shape = 'u8[8192]{0}', space=vmem, size = 0x2000, scoped, tag = 'input window, operand 9, single buffered']
    #allocation12 [shape = 's32[1]{0}', space=sflag, size = 0x4, scoped, tag = 'scoped memory for tpu_custom_call.1']
    #allocation13 [shape = 'u8[8192]{0}', space=vmem, size = 0x2000, scoped, tag = 'input window, operand 13, single buffered']
    #allocation14 [shape = 'u8[16384]{0}', space=vmem, size = 0x4000, scoped, tag = 'input window, operand 15, single buffered']
    #allocation15 [shape = 's32[1]{0}', space=sflag, size = 0x4, scoped, tag = 'scoped memory for tpu_custom_call.1']
    #allocation16 [shape = 'u8[32768]{0}', space=vmem, size = 0x8000, scoped, tag = 'input window, operand 17, single buffered']
    #allocation17 [shape = 'u8[16384]{0}', space=vmem, size = 0x4000, scoped, tag = 'output window, operand 0, single buffered']
    #allocation18 [shape = 'u8[32768]{0}', space=vmem, size = 0x8000, scoped, tag = 'output window, operand 1, single buffered']
    #allocation19 [shape = 's32[1]{0}', space=sflag, size = 0x4, scoped, tag = 'scoped memory for tpu_custom_call.1']
    %28 = vsyncpa [#allocation3], 0
    %29 = vsyncpa [#allocation6], 0
    %30 = vsyncpa [#allocation9], 0
    %31 = vsyncpa [#allocation12], 0
    %32 = vsyncpa [#allocation15], 0
    %33 = vsyncpa [#allocation4], 0
    %34 = vsyncpa [#allocation19], 0
    // Predicated region
    $region2: #{tpu_custom_call.1} parent=1 // pred_check
      _
    $region3: #{tpu_custom_call.1} parent=1 // pred_check_branch
      %36 = sbr.rel (0) target = $region5
    $region4: #{tpu_custom_call.1} parent=1 // pred_region
      %s38 = ssub.s32 1024, 1024
      %39 = vsyncadd [#allocation3], %s38
      %s40 = sshll.u32 [#allocation2], 4
      %s41 = int_to_ptr.vmem [resolvable:$true] %s40
      %46 = dma.hbm_to_vmem [thread:$0]  %s0, 1024, %s41, [#allocation3], 256, 256, 16
    $region5: #{tpu_custom_call.1} parent=1 // pred_fallthru
      _
    // Predicated region
    $region6: #{tpu_custom_call.1} parent=1 // pred_check
      _
    $region7: #{tpu_custom_call.1} parent=1 // pred_check_branch
      %48 = sbr.rel (0) target = $region9
    $region8: #{tpu_custom_call.1} parent=1 // pred_region
      _
    $region9: #{tpu_custom_call.1} parent=1 // pred_fallthru
      _
    // Predicated region
    $region10: #{tpu_custom_call.1} parent=1 // pred_check
      _
    $region11: #{tpu_custom_call.1} parent=1 // pred_check_branch
      %50 = sbr.rel (0) target = $region13
    $region12: #{tpu_custom_call.1} parent=1 // pred_region
      %s52 = ssub.s32 16, 16
      %53 = vsyncadd [#allocation6], %s52
      %s55 = sshll.u32 [#allocation5], 4
      %s56 = int_to_ptr.vmem [resolvable:$true] %s55
      %58 = dma.hbm_to_vmem [thread:$0]  %s2, 16, %s56, [#allocation6]
    $region13: #{tpu_custom_call.1} parent=1 // pred_fallthru
      _
    // Predicated region
    $region14: #{tpu_custom_call.1} parent=1 // pred_check
      _
    $region15: #{tpu_custom_call.1} parent=1 // pred_check_branch
      %60 = sbr.rel (0) target = $region17
    $region16: #{tpu_custom_call.1} parent=1 // pred_region
      _
    $region17: #{tpu_custom_call.1} parent=1 // pred_fallthru
      _
    // Predicated region
    $region18: #{tpu_custom_call.1} parent=1 // pred_check
      _
    $region19: #{tpu_custom_call.1} parent=1 // pred_check_branch
      %62 = sbr.rel (0) target = $region21
    $region20: #{tpu_custom_call.1} parent=1 // pred_region
      %s64 = ssub.s32 16, 16
      %65 = vsyncadd [#allocation6], %s64
      %s67 = sshll.u32 [#allocation7], 4
      %s68 = int_to_ptr.vmem [resolvable:$true] %s67
      %70 = dma.hbm_to_vmem [thread:$0]  %s4, 16, %s68, [#allocation6]
    $region21: #{tpu_custom_call.1} parent=1 // pred_fallthru
      _
    // Predicated region
    $region22: #{tpu_custom_call.1} parent=1 // pred_check
      _
    $region23: #{tpu_custom_call.1} parent=1 // pred_check_branch
      %72 = sbr.rel (0) target = $region25
    $region24: #{tpu_custom_call.1} parent=1 // pred_region
      _
    $region25: #{tpu_custom_call.1} parent=1 // pred_fallthru
      _
    // Predicated region
    $region26: #{tpu_custom_call.1} parent=1 // pred_check
      _
    $region27: #{tpu_custom_call.1} parent=1 // pred_check_branch
      %74 = sbr.rel (0) target = $region29
    $region28: #{tpu_custom_call.1} parent=1 // pred_region
      %s76 = ssub.s32 16, 16
      %77 = vsyncadd [#allocation9], %s76
      %s79 = sshll.u32 [#allocation8], 4
      %s80 = int_to_ptr.vmem [resolvable:$true] %s79
      %82 = dma.hbm_to_vmem [thread:$0]  %s6, 16, %s80, [#allocation9]
    $region29: #{tpu_custom_call.1} parent=1 // pred_fallthru
      _
    // Predicated region
    $region30: #{tpu_custom_call.1} parent=1 // pred_check
      _
    $region31: #{tpu_custom_call.1} parent=1 // pred_check_branch
      %84 = sbr.rel (0) target = $region33
    $region32: #{tpu_custom_call.1} parent=1 // pred_region
      _
    $region33: #{tpu_custom_call.1} parent=1 // pred_fallthru
      _
    // Predicated region
    $region34: #{tpu_custom_call.1} parent=1 // pred_check
      _
    $region35: #{tpu_custom_call.1} parent=1 // pred_check_branch
      %86 = sbr.rel (0) target = $region37
    $region36: #{tpu_custom_call.1} parent=1 // pred_region
      %s88 = ssub.s32 16, 16
      %89 = vsyncadd [#allocation9], %s88
      %s91 = sshll.u32 [#allocation10], 4
      %s92 = int_to_ptr.vmem [resolvable:$true] %s91
      %94 = dma.hbm_to_vmem [thread:$0]  %s8, 16, %s92, [#allocation9]
    $region37: #{tpu_custom_call.1} parent=1 // pred_fallthru
      _
    // Predicated region
    $region38: #{tpu_custom_call.1} parent=1 // pred_check
      _
    $region39: #{tpu_custom_call.1} parent=1 // pred_check_branch
      %96 = sbr.rel (0) target = $region41
    $region40: #{tpu_custom_call.1} parent=1 // pred_region
      %s98 = ssub.s32 256, 256
      %99 = vsyncadd [#allocation12], %s98
      %s100 = sshll.u32 [#allocation11], 4
      %s101 = int_to_ptr.vmem [resolvable:$true] %s100
      %106 = dma.hbm_to_vmem [thread:$0]  %s9, 256, %s101, [#allocation12], 128, 128, 8
    $region41: #{tpu_custom_call.1} parent=1 // pred_fallthru
      _
    // Predicated region
    $region42: #{tpu_custom_call.1} parent=1 // pred_check
      _
    $region43: #{tpu_custom_call.1} parent=1 // pred_check_branch
      %108 = sbr.rel (0) target = $region45
    $region44: #{tpu_custom_call.1} parent=1 // pred_region
      _
    $region45: #{tpu_custom_call.1} parent=1 // pred_fallthru
      _
    // Predicated region
    $region46: #{tpu_custom_call.1} parent=1 // pred_check
      _
    $region47: #{tpu_custom_call.1} parent=1 // pred_check_branch
      %110 = sbr.rel (0) target = $region49
    $region48: #{tpu_custom_call.1} parent=1 // pred_region
      _
    $region49: #{tpu_custom_call.1} parent=1 // pred_fallthru
      _
    // Predicated region
    $region50: #{tpu_custom_call.1} parent=1 // pred_check
      _
    $region51: #{tpu_custom_call.1} parent=1 // pred_check_branch
      %112 = sbr.rel (0) target = $region53
    $region52: #{tpu_custom_call.1} parent=1 // pred_region
      _
    $region53: #{tpu_custom_call.1} parent=1 // pred_fallthru
      _
    // Predicated region
    $region54: #{tpu_custom_call.1} parent=1 // pred_check
      _
    $region55: #{tpu_custom_call.1} parent=1 // pred_check_branch
      %114 = sbr.rel (0) target = $region57
    $region56: #{tpu_custom_call.1} parent=1 // pred_region
      %s116 = ssub.s32 256, 256
      %117 = vsyncadd [#allocation12], %s116
      %s118 = sshll.u32 [#allocation13], 4
      %s119 = int_to_ptr.vmem [resolvable:$true] %s118
      %124 = dma.hbm_to_vmem [thread:$0]  %s13, 256, %s119, [#allocation12], 128, 128, 8
    $region57: #{tpu_custom_call.1} parent=1 // pred_fallthru
      _
    // Predicated region
    $region58: #{tpu_custom_call.1} parent=1 // pred_check
      _
    $region59: #{tpu_custom_call.1} parent=1 // pred_check_branch
      %126 = sbr.rel (0) target = $region61
    $region60: #{tpu_custom_call.1} parent=1 // pred_region
      _
    $region61: #{tpu_custom_call.1} parent=1 // pred_fallthru
      _
    // Predicated region
    $region62: #{tpu_custom_call.1} parent=1 // pred_check
      _
    $region63: #{tpu_custom_call.1} parent=1 // pred_check_branch
      %128 = sbr.rel (0) target = $region65
    $region64: #{tpu_custom_call.1} parent=1 // pred_region
      %s130 = ssub.s32 512, 512
      %131 = vsyncadd [#allocation15], %s130
      %s132 = sshll.u32 [#allocation14], 4
      %s133 = int_to_ptr.vmem [resolvable:$true] %s132
      %138 = dma.hbm_to_vmem [thread:$0]  %s15, 512, %s133, [#allocation15], 128, 128, 8
    $region65: #{tpu_custom_call.1} parent=1 // pred_fallthru
      _
    // Predicated region
    $region66: #{tpu_custom_call.1} parent=1 // pred_check
      _
    $region67: #{tpu_custom_call.1} parent=1 // pred_check_branch
      %140 = sbr.rel (0) target = $region69
    $region68: #{tpu_custom_call.1} parent=1 // pred_region
      _
    $region69: #{tpu_custom_call.1} parent=1 // pred_fallthru
      _
    // Predicated region
    $region70: #{tpu_custom_call.1} parent=1 // pred_check
      _
    $region71: #{tpu_custom_call.1} parent=1 // pred_check_branch
      %142 = sbr.rel (0) target = $region73
    $region72: #{tpu_custom_call.1} parent=1 // pred_region
      %s144 = ssub.s32 1024, 1024
      %145 = vsyncadd [#allocation15], %s144
      %s146 = sshll.u32 [#allocation16], 4
      %s147 = int_to_ptr.vmem [resolvable:$true] %s146
      %152 = dma.hbm_to_vmem [thread:$0]  %s17, 1024, %s147, [#allocation15], 128, 128, 8
    $region73: #{tpu_custom_call.1} parent=1 // pred_fallthru
      _
    // Predicated region
    $region74: #{tpu_custom_call.1} parent=1 // pred_check
      _
    $region75: #{tpu_custom_call.1} parent=1 // pred_check_branch
      %154 = sbr.rel (0) target = $region77
    $region76: #{tpu_custom_call.1} parent=1 // pred_region
      _
    $region77: #{tpu_custom_call.1} parent=1 // pred_fallthru
      _
    // Predicated region
    $region78: #{tpu_custom_call.1} parent=1 // pred_check
      _
    $region79: #{tpu_custom_call.1} parent=1 // pred_check_branch
      %156 = sbr.rel (0) target = $region81
    $region80: #{tpu_custom_call.1} parent=1 // pred_region
      _
    $region81: #{tpu_custom_call.1} parent=1 // pred_fallthru
      _
    // Predicated region
    $region82: #{tpu_custom_call.1} parent=1 // pred_check
      _
    $region83: #{tpu_custom_call.1} parent=1 // pred_check_branch
      %158 = sbr.rel (0) target = $region85
    $region84: #{tpu_custom_call.1} parent=1 // pred_region
      _
    $region85: #{tpu_custom_call.1} parent=1 // pred_fallthru
      _
    // Predicated region
    $region86: #{tpu_custom_call.1} parent=1 // pred_check
      _
    $region87: #{tpu_custom_call.1} parent=1 // pred_check_branch
      %160 = sbr.rel (0) target = $region89
    $region88: #{tpu_custom_call.1} parent=1 // pred_region
      %161 = dma.done [#allocation3], 1024
    $region89: #{tpu_custom_call.1} parent=1 // pred_fallthru
      _
    // Predicated region
    $region90: #{tpu_custom_call.1} parent=1 // pred_check
      _
    $region91: #{tpu_custom_call.1} parent=1 // pred_check_branch
      %163 = sbr.rel (0) target = $region93
    $region92: #{tpu_custom_call.1} parent=1 // pred_region
      %164 = dma.done [#allocation6], 16
    $region93: #{tpu_custom_call.1} parent=1 // pred_fallthru
      _
    // Predicated region
    $region94: #{tpu_custom_call.1} parent=1 // pred_check
      _
    $region95: #{tpu_custom_call.1} parent=1 // pred_check_branch
      %166 = sbr.rel (0) target = $region97
    $region96: #{tpu_custom_call.1} parent=1 // pred_region
      %167 = dma.done [#allocation6], 16
    $region97: #{tpu_custom_call.1} parent=1 // pred_fallthru
      _
    // Predicated region
    $region98: #{tpu_custom_call.1} parent=1 // pred_check
      _
    $region99: #{tpu_custom_call.1} parent=1 // pred_check_branch
      %169 = sbr.rel (0) target = $region101
    $region100: #{tpu_custom_call.1} parent=1 // pred_region
      %170 = dma.done [#allocation9], 16
    $region101: #{tpu_custom_call.1} parent=1 // pred_fallthru
      _
    // Predicated region
    $region102: #{tpu_custom_call.1} parent=1 // pred_check
      _
    $region103: #{tpu_custom_call.1} parent=1 // pred_check_branch
      %172 = sbr.rel (0) target = $region105
    $region104: #{tpu_custom_call.1} parent=1 // pred_region
      %173 = dma.done [#allocation9], 16
    $region105: #{tpu_custom_call.1} parent=1 // pred_fallthru
      _
    // Predicated region
    $region106: #{tpu_custom_call.1} parent=1 // pred_check
      _
    $region107: #{tpu_custom_call.1} parent=1 // pred_check_branch
      %175 = sbr.rel (0) target = $region109
    $region108: #{tpu_custom_call.1} parent=1 // pred_region
      %176 = dma.done [#allocation12], 256
    $region109: #{tpu_custom_call.1} parent=1 // pred_fallthru
      _
    // Predicated region
    $region110: #{tpu_custom_call.1} parent=1 // pred_check
      _
    $region111: #{tpu_custom_call.1} parent=1 // pred_check_branch
      %178 = sbr.rel (0) target = $region113
    $region112: #{tpu_custom_call.1} parent=1 // pred_region
      %179 = dma.done [#allocation12], 256
    $region113: #{tpu_custom_call.1} parent=1 // pred_fallthru
      _
    // Predicated region
    $region114: #{tpu_custom_call.1} parent=1 // pred_check
      _
    $region115: #{tpu_custom_call.1} parent=1 // pred_check_branch
      %181 = sbr.rel (0) target = $region117
    $region116: #{tpu_custom_call.1} parent=1 // pred_region
      %182 = dma.done [#allocation15], 512
    $region117: #{tpu_custom_call.1} parent=1 // pred_fallthru
      _
    // Predicated region
    $region118: #{tpu_custom_call.1} parent=1 // pred_check
      _
    $region119: #{tpu_custom_call.1} parent=1 // pred_check_branch
      %184 = sbr.rel (0) target = $region121
    $region120: #{tpu_custom_call.1} parent=1 // pred_region
      %185 = dma.done [#allocation15], 1024
    $region121: #{tpu_custom_call.1} parent=1 // pred_fallthru
      _
    %v186 = vld [vmem:[#allocation2] sm:$0xff]
    %v187 = vld [vmem:[#allocation2 + $0x8] sm:$0xff]
    %v188 = vld [vmem:[#allocation2 + $0x10] sm:$0xff]
    %v189 = vld [vmem:[#allocation2 + $0x18] sm:$0xff]
    %v190 = vld [vmem:[#allocation2 + $0x20] sm:$0xff]
    %v191 = vld [vmem:[#allocation2 + $0x28] sm:$0xff]
    %v192 = vld [vmem:[#allocation2 + $0x30] sm:$0xff]
    %v193 = vld [vmem:[#allocation2 + $0x38] sm:$0xff]
    %v194 = vld [vmem:[%s1] sm:$0xff]
    %v195 = vld [vmem:[%s1 + $0x8] sm:$0xff]
    %v196 = vld [vmem:[%s1 + $0x10] sm:$0xff]
    %v197 = vld [vmem:[%s1 + $0x18] sm:$0xff]
    %v198 = vld [vmem:[%s1 + $0x20] sm:$0xff]
    %v199 = vld [vmem:[%s1 + $0x28] sm:$0xff]
    %v200 = vld [vmem:[%s1 + $0x30] sm:$0xff]
    %v201 = vld [vmem:[%s1 + $0x38] sm:$0xff]
    %v202 = vld [vmem:[%s1 + $0x40] sm:$0xff]
    %v203 = vld [vmem:[%s1 + $0x48] sm:$0xff]
    %v204 = vld [vmem:[%s1 + $0x50] sm:$0xff]
    %v205 = vld [vmem:[%s1 + $0x58] sm:$0xff]
    %v206 = vld [vmem:[%s1 + $0x60] sm:$0xff]
    %v207 = vld [vmem:[%s1 + $0x68] sm:$0xff]
    %v208 = vld [vmem:[%s1 + $0x70] sm:$0xff]
    %v209 = vld [vmem:[%s1 + $0x78] sm:$0xff]
    %v210 = vld [vmem:[%s1 + $0x80] sm:$0xff]
    %v211 = vld [vmem:[%s1 + $0x88] sm:$0xff]
    %v212 = vld [vmem:[%s1 + $0x90] sm:$0xff]
    %v213 = vld [vmem:[%s1 + $0x98] sm:$0xff]
    %v214 = vld [vmem:[%s1 + $0xa0] sm:$0xff]
    %v215 = vld [vmem:[%s1 + $0xa8] sm:$0xff]
    %v216 = vld [vmem:[%s1 + $0xb0] sm:$0xff]
    %v217 = vld [vmem:[%s1 + $0xb8] sm:$0xff]
    %v218 = vld [vmem:[%s1 + $0xc0] sm:$0xff]
    %v219 = vld [vmem:[%s1 + $0xc8] sm:$0xff]
    %v220 = vld [vmem:[%s1 + $0xd0] sm:$0xff]
    %v221 = vld [vmem:[%s1 + $0xd8] sm:$0xff]
    %v222 = vld [vmem:[%s1 + $0xe0] sm:$0xff]
    %v223 = vld [vmem:[%s1 + $0xe8] sm:$0xff]
    %v224 = vld [vmem:[%s1 + $0xf0] sm:$0xff]
    %v225 = vld [vmem:[%s1 + $0xf8] sm:$0xff]
    %v226 = vld [vmem:[#allocation5] sm:$0x1]
    %v228 = vlaneseq
    %v229 = vshrl.u32 %v228, 7
    %v230 = vsub.s32 0, %v229
    %v231 = vrot.slane %v226, %v230
    %233 = vmatprep.subr.mxu0 0.0
    %234 = vmatpush1.msra.mxu0 %v194
    %235 = vmatprep.subr.mxu0 0.0
    %236 = vmatpush1.msra.mxu0 %v195
    %237 = vmatprep.subr.mxu0 0.0
    %238 = vmatpush1.msra.mxu0 %v196
    %239 = vmatprep.subr.mxu0 0.0
    %240 = vmatpush1.msra.mxu0 %v197
    %241 = vmatprep.subr.mxu0 0.0
    %242 = vmatpush1.msra.mxu0 %v198
    %243 = vmatprep.subr.mxu0 0.0
    %244 = vmatpush1.msra.mxu0 %v199
    %245 = vmatprep.subr.mxu0 0.0
    %246 = vmatpush1.msra.mxu0 %v200
    %247 = vmatprep.subr.mxu0 0.0
    %248 = vmatpush1.msra.mxu0 %v201
    %249 = vmatprep.subr.mxu0 0.0
    %250 = vmatpush1.msra.mxu0 %v202
    %251 = vmatprep.subr.mxu0 0.0
    %252 = vmatpush1.msra.mxu0 %v203
    %253 = vmatprep.subr.mxu0 0.0
    %254 = vmatpush1.msra.mxu0 %v204
    %255 = vmatprep.subr.mxu0 0.0
    %256 = vmatpush1.msra.mxu0 %v205
    %257 = vmatprep.subr.mxu0 0.0
    %258 = vmatpush1.msra.mxu0 %v206
    %259 = vmatprep.subr.mxu0 0.0
    %260 = vmatpush1.msra.mxu0 %v207
    %261 = vmatprep.subr.mxu0 0.0
    %262 = vmatpush1.msra.mxu0 %v208
    %263 = vmatprep.subr.mxu0 0.0
    %264 = vmatpush1.msra.mxu0 %v209
    %265 = vmatprep.subr.mxu0 0.0
    %266 = vmatpush1.msra.mxu0 %v210
    %267 = vmatprep.subr.mxu0 0.0
    %268 = vmatpush1.msra.mxu0 %v211
    %269 = vmatprep.subr.mxu0 0.0
    %270 = vmatpush1.msra.mxu0 %v212
    %271 = vmatprep.subr.mxu0 0.0
    %272 = vmatpush1.msra.mxu0 %v213
    %273 = vmatprep.subr.mxu0 0.0
    %274 = vmatpush1.msra.mxu0 %v214
    %275 = vmatprep.subr.mxu0 0.0
    %276 = vmatpush1.msra.mxu0 %v215
    %277 = vmatprep.subr.mxu0 0.0
    %278 = vmatpush1.msra.mxu0 %v216
    %279 = vmatprep.subr.mxu0 0.0
    %280 = vmatpush1.msra.mxu0 %v217
    %281 = vmatprep.subr.mxu0 0.0
    %282 = vmatpush1.msra.mxu0 %v218
    %283 = vmatprep.subr.mxu0 0.0
    %284 = vmatpush1.msra.mxu0 %v219
    %285 = vmatprep.subr.mxu0 0.0
    %286 = vmatpush1.msra.mxu0 %v220
    %287 = vmatprep.subr.mxu0 0.0
    %288 = vmatpush1.msra.mxu0 %v221
    %289 = vmatprep.subr.mxu0 0.0
    %290 = vmatpush1.msra.mxu0 %v222
    %291 = vmatprep.subr.mxu0 0.0
    %292 = vmatpush1.msra.mxu0 %v223
    %293 = vmatprep.subr.mxu0 0.0
    %294 = vmatpush1.msra.mxu0 %v224
    %295 = vmatprep.subr.mxu0 0.0
    %296 = vmatpush1.msra.mxu0 %v225
    %297 = vmatprep.mubr.f32.mxu0 %v187
    %298 = vmatmul.mubr.f32.gmra.mrb[0].mxu0 %v186
    %v299 = vpop.f32.mrb[0].mxu0
    %v300 = vadd.f32 %v231, %v299
    %v301 = vpop.f32.mrb[0].mxu0
    %302 = vmatprep.mubr.f32.mxu0 %v189
    %303 = vmatmul.mubr.f32.gmra.mrb[0].mxu0 %v188
    %v304 = vpop.f32.mrb[0].mxu0
    %v305 = vadd.f32 %v231, %v304
    %v306 = vpop.f32.mrb[0].mxu0
    %307 = vmatprep.mubr.f32.mxu0 %v191
    %308 = vmatmul.mubr.f32.gmra.mrb[0].mxu0 %v190
    %v309 = vpop.f32.mrb[0].mxu0
    %v310 = vadd.f32 %v231, %v309
    %v311 = vpop.f32.mrb[0].mxu0
    %312 = vmatprep.mubr.f32.mxu0 %v193
    %313 = vmatmul.mubr.f32.gmra.mrb[0].mxu0 %v192
    %v314 = vpop.f32.mrb[0].mxu0
    %v315 = vadd.f32 %v231, %v314
    %v316 = vpop.f32.mrb[0].mxu0
    %317 = vdwg.mxu0
    %v318 = vmax.f32 %v300, 0.0
    %v319 = vmax.f32 %v305, 0.0
    %v320 = vmax.f32 %v310, 0.0
    %v321 = vmax.f32 %v315, 0.0
    %v322 = vld [vmem:[%s3] sm:$0xff]
    %v323 = vld [vmem:[%s3 + $0x8] sm:$0xff]
    %v324 = vld [vmem:[%s3 + $0x10] sm:$0xff]
    %v325 = vld [vmem:[%s3 + $0x18] sm:$0xff]
    %v326 = vld [vmem:[%s3 + $0x20] sm:$0xff]
    %v327 = vld [vmem:[%s3 + $0x28] sm:$0xff]
    %v328 = vld [vmem:[%s3 + $0x30] sm:$0xff]
    %v329 = vld [vmem:[%s3 + $0x38] sm:$0xff]
    %v330 = vld [vmem:[%s3 + $0x40] sm:$0xff]
    %v331 = vld [vmem:[%s3 + $0x48] sm:$0xff]
    %v332 = vld [vmem:[%s3 + $0x50] sm:$0xff]
    %v333 = vld [vmem:[%s3 + $0x58] sm:$0xff]
    %v334 = vld [vmem:[%s3 + $0x60] sm:$0xff]
    %v335 = vld [vmem:[%s3 + $0x68] sm:$0xff]
    %v336 = vld [vmem:[%s3 + $0x70] sm:$0xff]
    %v337 = vld [vmem:[%s3 + $0x78] sm:$0xff]
    %v338 = vld [vmem:[#allocation7] sm:$0x1]
    %v340 = vlaneseq
    %v341 = vshrl.u32 %v340, 7
    %v342 = vsub.s32 0, %v341
    %v343 = vrot.slane %v338, %v342
    %345 = vmatprep.subr.mxu0 0.0
    %346 = vmatpush1.msra.mxu0 %v322
    %347 = vmatprep.subr.mxu0 0.0
    %348 = vmatpush1.msra.mxu0 %v323
    %349 = vmatprep.subr.mxu0 0.0
    %350 = vmatpush1.msra.mxu0 %v324
    %351 = vmatprep.subr.mxu0 0.0
    %352 = vmatpush1.msra.mxu0 %v325
    %353 = vmatprep.subr.mxu0 0.0
    %354 = vmatpush1.msra.mxu0 %v326
    %355 = vmatprep.subr.mxu0 0.0
    %356 = vmatpush1.msra.mxu0 %v327
    %357 = vmatprep.subr.mxu0 0.0
    %358 = vmatpush1.msra.mxu0 %v328
    %359 = vmatprep.subr.mxu0 0.0
    %360 = vmatpush1.msra.mxu0 %v329
    %361 = vmatprep.subr.mxu0 0.0
    %362 = vmatpush1.msra.mxu0 %v330
    %363 = vmatprep.subr.mxu0 0.0
    %364 = vmatpush1.msra.mxu0 %v331
    %365 = vmatprep.subr.mxu0 0.0
    %366 = vmatpush1.msra.mxu0 %v332
    %367 = vmatprep.subr.mxu0 0.0
    %368 = vmatpush1.msra.mxu0 %v333
    %369 = vmatprep.subr.mxu0 0.0
    %370 = vmatpush1.msra.mxu0 %v334
    %371 = vmatprep.subr.mxu0 0.0
    %372 = vmatpush1.msra.mxu0 %v335
    %373 = vmatprep.subr.mxu0 0.0
    %374 = vmatpush1.msra.mxu0 %v336
    %375 = vmatprep.subr.mxu0 0.0
    %376 = vmatpush1.msra.mxu0 %v337
    %377 = vmatprep.subr.mxu0 0.0
    %378 = vmatpush1.msra.mxu0 0.0
    %379 = vmatprep.subr.mxu0 0.0
    %380 = vmatpush1.msra.mxu0 0.0
    %381 = vmatprep.subr.mxu0 0.0
    %382 = vmatpush1.msra.mxu0 0.0
    %383 = vmatprep.subr.mxu0 0.0
    %384 = vmatpush1.msra.mxu0 0.0
    %385 = vmatprep.subr.mxu0 0.0
    %386 = vmatpush1.msra.mxu0 0.0
    %387 = vmatprep.subr.mxu0 0.0
    %388 = vmatpush1.msra.mxu0 0.0
    %389 = vmatprep.subr.mxu0 0.0
    %390 = vmatpush1.msra.mxu0 0.0
    %391 = vmatprep.subr.mxu0 0.0
    %392 = vmatpush1.msra.mxu0 0.0
    %393 = vmatprep.subr.mxu0 0.0
    %394 = vmatpush1.msra.mxu0 0.0
    %395 = vmatprep.subr.mxu0 0.0
    %396 = vmatpush1.msra.mxu0 0.0
    %397 = vmatprep.subr.mxu0 0.0
    %398 = vmatpush1.msra.mxu0 0.0
    %399 = vmatprep.subr.mxu0 0.0
    %400 = vmatpush1.msra.mxu0 0.0
    %401 = vmatprep.subr.mxu0 0.0
    %402 = vmatpush1.msra.mxu0 0.0
    %403 = vmatprep.subr.mxu0 0.0
    %404 = vmatpush1.msra.mxu0 0.0
    %405 = vmatprep.subr.mxu0 0.0
    %406 = vmatpush1.msra.mxu0 0.0
    %407 = vmatprep.subr.mxu0 0.0
    %408 = vmatpush1.msra.mxu0 0.0
    %409 = vmatprep.mubr.f32.mxu0 0.0
    %410 = vmatmul.mubr.f32.gmra.mrb[0].mxu0 %v318
    %v411 = vpop.f32.mrb[0].mxu0
    %v412 = vadd.f32 %v343, %v411
    %v413 = vpop.f32.mrb[0].mxu0
    %414 = vmatprep.mubr.f32.mxu0 0.0
    %415 = vmatmul.mubr.f32.gmra.mrb[0].mxu0 %v319
    %v416 = vpop.f32.mrb[0].mxu0
    %v417 = vadd.f32 %v343, %v416
    %v418 = vpop.f32.mrb[0].mxu0
    %419 = vmatprep.mubr.f32.mxu0 0.0
    %420 = vmatmul.mubr.f32.gmra.mrb[0].mxu0 %v320
    %v421 = vpop.f32.mrb[0].mxu0
    %v422 = vadd.f32 %v343, %v421
    %v423 = vpop.f32.mrb[0].mxu0
    %424 = vmatprep.mubr.f32.mxu0 0.0
    %425 = vmatmul.mubr.f32.gmra.mrb[0].mxu0 %v321
    %v426 = vpop.f32.mrb[0].mxu0
    %v427 = vadd.f32 %v343, %v426
    %v428 = vpop.f32.mrb[0].mxu0
    %429 = vdwg.mxu0
    %v430 = vmax.f32 %v412, 0.0
    %v431 = vmax.f32 %v417, 0.0
    %v432 = vmax.f32 %v422, 0.0
    %v433 = vmax.f32 %v427, 0.0
    %v434 = vld [vmem:[%s5] sm:$0xff]
    %v435 = vld [vmem:[%s5 + $0x8] sm:$0xff]
    %v436 = vld [vmem:[%s5 + $0x10] sm:$0xff]
    %v437 = vld [vmem:[%s5 + $0x18] sm:$0xff]
    %v438 = vld [vmem:[%s5 + $0x20] sm:$0xff]
    %v439 = vld [vmem:[%s5 + $0x28] sm:$0xff]
    %v440 = vld [vmem:[%s5 + $0x30] sm:$0xff]
    %v441 = vld [vmem:[%s5 + $0x38] sm:$0xff]
    %v442 = vld [vmem:[#allocation8] sm:$0x1]
    %v444 = vlaneseq
    %v445 = vshrl.u32 %v444, 7
    %v446 = vsub.s32 0, %v445
    %v447 = vrot.slane %v442, %v446
    %vm449 = vcmask 523264
    %v451 = vsel %vm449, %v430, 0
    %v454 = vsel %vm449, %v431, 0
    %v457 = vsel %vm449, %v432, 0
    %v460 = vsel %vm449, %v433, 0
    %462 = vmatprep.subr.mxu0 0.0
    %463 = vmatpush1.msra.mxu0 %v434
    %464 = vmatprep.subr.mxu0 0.0
    %465 = vmatpush1.msra.mxu0 %v435
    %466 = vmatprep.subr.mxu0 0.0
    %467 = vmatpush1.msra.mxu0 %v436
    %468 = vmatprep.subr.mxu0 0.0
    %469 = vmatpush1.msra.mxu0 %v437
    %470 = vmatprep.subr.mxu0 0.0
    %471 = vmatpush1.msra.mxu0 %v438
    %472 = vmatprep.subr.mxu0 0.0
    %473 = vmatpush1.msra.mxu0 %v439
    %474 = vmatprep.subr.mxu0 0.0
    %475 = vmatpush1.msra.mxu0 %v440
    %476 = vmatprep.subr.mxu0 0.0
    %477 = vmatpush1.msra.mxu0 %v441
    %478 = vmatprep.subr.mxu0 0.0
    %479 = vmatpush1.msra.mxu0 0.0
    %480 = vmatprep.subr.mxu0 0.0
    %481 = vmatpush1.msra.mxu0 0.0
    %482 = vmatprep.subr.mxu0 0.0
    %483 = vmatpush1.msra.mxu0 0.0
    %484 = vmatprep.subr.mxu0 0.0
    %485 = vmatpush1.msra.mxu0 0.0
    %486 = vmatprep.subr.mxu0 0.0
    %487 = vmatpush1.msra.mxu0 0.0
    %488 = vmatprep.subr.mxu0 0.0
    %489 = vmatpush1.msra.mxu0 0.0
    %490 = vmatprep.subr.mxu0 0.0
    %491 = vmatpush1.msra.mxu0 0.0
    %492 = vmatprep.subr.mxu0 0.0
    %493 = vmatpush1.msra.mxu0 0.0
    %494 = vmatprep.subr.mxu0 0.0
    %495 = vmatpush1.msra.mxu0 0.0
    %496 = vmatprep.subr.mxu0 0.0
    %497 = vmatpush1.msra.mxu0 0.0
    %498 = vmatprep.subr.mxu0 0.0
    %499 = vmatpush1.msra.mxu0 0.0
    %500 = vmatprep.subr.mxu0 0.0
    %501 = vmatpush1.msra.mxu0 0.0
    %502 = vmatprep.subr.mxu0 0.0
    %503 = vmatpush1.msra.mxu0 0.0
    %504 = vmatprep.subr.mxu0 0.0
    %505 = vmatpush1.msra.mxu0 0.0
    %506 = vmatprep.subr.mxu0 0.0
    %507 = vmatpush1.msra.mxu0 0.0
    %508 = vmatprep.subr.mxu0 0.0
    %509 = vmatpush1.msra.mxu0 0.0
    %510 = vmatprep.subr.mxu0 0.0
    %511 = vmatpush1.msra.mxu0 0.0
    %512 = vmatprep.subr.mxu0 0.0
    %513 = vmatpush1.msra.mxu0 0.0
    %514 = vmatprep.subr.mxu0 0.0
    %515 = vmatpush1.msra.mxu0 0.0
    %516 = vmatprep.subr.mxu0 0.0
    %517 = vmatpush1.msra.mxu0 0.0
    %518 = vmatprep.subr.mxu0 0.0
    %519 = vmatpush1.msra.mxu0 0.0
    %520 = vmatprep.subr.mxu0 0.0
    %521 = vmatpush1.msra.mxu0 0.0
    %522 = vmatprep.subr.mxu0 0.0
    %523 = vmatpush1.msra.mxu0 0.0
    %524 = vmatprep.subr.mxu0 0.0
    %525 = vmatpush1.msra.mxu0 0.0
    %526 = vmatprep.mubr.f32.mxu0 0.0
    %527 = vmatmul.mubr.f32.gmra.mrb[0].mxu0 %v451
    %v528 = vpop.f32.mrb[0].mxu0
    %v529 = vadd.f32 %v447, %v528
    %v530 = vpop.f32.mrb[0].mxu0
    %531 = vmatprep.mubr.f32.mxu0 0.0
    %532 = vmatmul.mubr.f32.gmra.mrb[0].mxu0 %v454
    %v533 = vpop.f32.mrb[0].mxu0
    %v534 = vadd.f32 %v447, %v533
    %v535 = vpop.f32.mrb[0].mxu0
    %536 = vmatprep.mubr.f32.mxu0 0.0
    %537 = vmatmul.mubr.f32.gmra.mrb[0].mxu0 %v457
    %v538 = vpop.f32.mrb[0].mxu0
    %v539 = vadd.f32 %v447, %v538
    %v540 = vpop.f32.mrb[0].mxu0
    %541 = vmatprep.mubr.f32.mxu0 0.0
    %542 = vmatmul.mubr.f32.gmra.mrb[0].mxu0 %v460
    %v543 = vpop.f32.mrb[0].mxu0
    %v544 = vadd.f32 %v447, %v543
    %v545 = vpop.f32.mrb[0].mxu0
    %546 = vdwg.mxu0
    %v547 = vmax.f32 %v529, 0.0
    %v548 = vmax.f32 %v534, 0.0
    %v549 = vmax.f32 %v539, 0.0
    %v550 = vmax.f32 %v544, 0.0
    %v551 = vld [vmem:[%s7] sm:$0xff]
    %v552 = vld [vmem:[%s7 + $0x8] sm:$0xff]
    %v553 = vld [vmem:[%s7 + $0x10] sm:$0xff]
    %v554 = vld [vmem:[%s7 + $0x18] sm:$0xff]
    %v555 = vld [vmem:[#allocation10] sm:$0x1]
    %v557 = vlaneseq
    %v558 = vshrl.u32 %v557, 7
    %v559 = vsub.s32 0, %v558
    %v560 = vrot.slane %v555, %v559
    %vm562 = vcmask 261120
    %v564 = vsel %vm562, %v547, 0
    %v567 = vsel %vm562, %v548, 0
    %v570 = vsel %vm562, %v549, 0
    %v573 = vsel %vm562, %v550, 0
    %575 = vmatprep.subr.mxu0 0.0
    %576 = vmatpush1.msra.mxu0 %v551
    %577 = vmatprep.subr.mxu0 0.0
    %578 = vmatpush1.msra.mxu0 %v552
    %579 = vmatprep.subr.mxu0 0.0
    %580 = vmatpush1.msra.mxu0 %v553
    %581 = vmatprep.subr.mxu0 0.0
    %582 = vmatpush1.msra.mxu0 %v554
    %583 = vmatprep.subr.mxu0 0.0
    %584 = vmatpush1.msra.mxu0 0.0
    %585 = vmatprep.subr.mxu0 0.0
    %586 = vmatpush1.msra.mxu0 0.0
    %587 = vmatprep.subr.mxu0 0.0
    %588 = vmatpush1.msra.mxu0 0.0
    %589 = vmatprep.subr.mxu0 0.0
    %590 = vmatpush1.msra.mxu0 0.0
    %591 = vmatprep.subr.mxu0 0.0
    %592 = vmatpush1.msra.mxu0 0.0
    %593 = vmatprep.subr.mxu0 0.0
    %594 = vmatpush1.msra.mxu0 0.0
    %595 = vmatprep.subr.mxu0 0.0
    %596 = vmatpush1.msra.mxu0 0.0
    %597 = vmatprep.subr.mxu0 0.0
    %598 = vmatpush1.msra.mxu0 0.0
    %599 = vmatprep.subr.mxu0 0.0
    %600 = vmatpush1.msra.mxu0 0.0
    %601 = vmatprep.subr.mxu0 0.0
    %602 = vmatpush1.msra.mxu0 0.0
    %603 = vmatprep.subr.mxu0 0.0
    %604 = vmatpush1.msra.mxu0 0.0
    %605 = vmatprep.subr.mxu0 0.0
    %606 = vmatpush1.msra.mxu0 0.0
    %607 = vmatprep.subr.mxu0 0.0
    %608 = vmatpush1.msra.mxu0 0.0
    %609 = vmatprep.subr.mxu0 0.0
    %610 = vmatpush1.msra.mxu0 0.0
    %611 = vmatprep.subr.mxu0 0.0
    %612 = vmatpush1.msra.mxu0 0.0
    %613 = vmatprep.subr.mxu0 0.0
    %614 = vmatpush1.msra.mxu0 0.0
    %615 = vmatprep.subr.mxu0 0.0
    %616 = vmatpush1.msra.mxu0 0.0
    %617 = vmatprep.subr.mxu0 0.0
    %618 = vmatpush1.msra.mxu0 0.0
    %619 = vmatprep.subr.mxu0 0.0
    %620 = vmatpush1.msra.mxu0 0.0
    %621 = vmatprep.subr.mxu0 0.0
    %622 = vmatpush1.msra.mxu0 0.0
    %623 = vmatprep.subr.mxu0 0.0
    %624 = vmatpush1.msra.mxu0 0.0
    %625 = vmatprep.subr.mxu0 0.0
    %626 = vmatpush1.msra.mxu0 0.0
    %627 = vmatprep.subr.mxu0 0.0
    %628 = vmatpush1.msra.mxu0 0.0
    %629 = vmatprep.subr.mxu0 0.0
    %630 = vmatpush1.msra.mxu0 0.0
    %631 = vmatprep.subr.mxu0 0.0
    %632 = vmatpush1.msra.mxu0 0.0
    %633 = vmatprep.subr.mxu0 0.0
    %634 = vmatpush1.msra.mxu0 0.0
    %635 = vmatprep.subr.mxu0 0.0
    %636 = vmatpush1.msra.mxu0 0.0
    %637 = vmatprep.subr.mxu0 0.0
    %638 = vmatpush1.msra.mxu0 0.0
    %639 = vmatprep.mubr.f32.mxu0 0.0
    %640 = vmatmul.mubr.f32.gmra.mrb[0].mxu0 %v564
    %v641 = vpop.f32.mrb[0].mxu0
    %v642 = vadd.f32 %v560, %v641
    %v643 = vpop.f32.mrb[0].mxu0
    %644 = vmatprep.mubr.f32.mxu0 0.0
    %645 = vmatmul.mubr.f32.gmra.mrb[0].mxu0 %v567
    %v646 = vpop.f32.mrb[0].mxu0
    %v647 = vadd.f32 %v560, %v646
    %v648 = vpop.f32.mrb[0].mxu0
    %649 = vmatprep.mubr.f32.mxu0 0.0
    %650 = vmatmul.mubr.f32.gmra.mrb[0].mxu0 %v570
    %v651 = vpop.f32.mrb[0].mxu0
    %v652 = vadd.f32 %v560, %v651
    %v653 = vpop.f32.mrb[0].mxu0
    %654 = vmatprep.mubr.f32.mxu0 0.0
    %655 = vmatmul.mubr.f32.gmra.mrb[0].mxu0 %v573
    %v656 = vpop.f32.mrb[0].mxu0
    %v657 = vadd.f32 %v560, %v656
    %v658 = vpop.f32.mrb[0].mxu0
    %659 = vdwg.mxu0
    %v660 = vmax.f32 %v642, 0.0
    %v661 = vmax.f32 %v647, 0.0
    %v662 = vmax.f32 %v652, 0.0
    %v663 = vmax.f32 %v657, 0.0
    %v664 = vld [vmem:[#allocation11] sm:$0xff]
    %v665 = vld [vmem:[#allocation11 + $0x8] sm:$0xff]
    %v666 = vld [vmem:[%s10] sm:$0x1]
    %v668 = vlaneseq
    %v669 = vshrl.u32 %v668, 7
    %v670 = vsub.s32 0, %v669
    %v671 = vrot.slane %v666, %v670
    %vm673 = vcmask 130048
    %v675 = vsel %vm673, %v660, 0
    %v678 = vsel %vm673, %v661, 0
    %v681 = vsel %vm673, %v662, 0
    %v684 = vsel %vm673, %v663, 0
    %686 = vmatprep.subr.mxu0 0.0
    %687 = vmatpush1.msra.mxu0 %v664
    %688 = vmatprep.subr.mxu0 0.0
    %689 = vmatpush1.msra.mxu0 %v665
    %690 = vmatprep.subr.mxu0 0.0
    %691 = vmatpush1.msra.mxu0 0.0
    %692 = vmatprep.subr.mxu0 0.0
    %693 = vmatpush1.msra.mxu0 0.0
    %694 = vmatprep.subr.mxu0 0.0
    %695 = vmatpush1.msra.mxu0 0.0
    %696 = vmatprep.subr.mxu0 0.0
    %697 = vmatpush1.msra.mxu0 0.0
    %698 = vmatprep.subr.mxu0 0.0
    %699 = vmatpush1.msra.mxu0 0.0
    %700 = vmatprep.subr.mxu0 0.0
    %701 = vmatpush1.msra.mxu0 0.0
    %702 = vmatprep.subr.mxu0 0.0
    %703 = vmatpush1.msra.mxu0 0.0
    %704 = vmatprep.subr.mxu0 0.0
    %705 = vmatpush1.msra.mxu0 0.0
    %706 = vmatprep.subr.mxu0 0.0
    %707 = vmatpush1.msra.mxu0 0.0
    %708 = vmatprep.subr.mxu0 0.0
    %709 = vmatpush1.msra.mxu0 0.0
    %710 = vmatprep.subr.mxu0 0.0
    %711 = vmatpush1.msra.mxu0 0.0
    %712 = vmatprep.subr.mxu0 0.0
    %713 = vmatpush1.msra.mxu0 0.0
    %714 = vmatprep.subr.mxu0 0.0
    %715 = vmatpush1.msra.mxu0 0.0
    %716 = vmatprep.subr.mxu0 0.0
    %717 = vmatpush1.msra.mxu0 0.0
    %718 = vmatprep.subr.mxu0 0.0
    %719 = vmatpush1.msra.mxu0 0.0
    %720 = vmatprep.subr.mxu0 0.0
    %721 = vmatpush1.msra.mxu0 0.0
    %722 = vmatprep.subr.mxu0 0.0
    %723 = vmatpush1.msra.mxu0 0.0
    %724 = vmatprep.subr.mxu0 0.0
    %725 = vmatpush1.msra.mxu0 0.0
    %726 = vmatprep.subr.mxu0 0.0
    %727 = vmatpush1.msra.mxu0 0.0
    %728 = vmatprep.subr.mxu0 0.0
    %729 = vmatpush1.msra.mxu0 0.0
    %730 = vmatprep.subr.mxu0 0.0
    %731 = vmatpush1.msra.mxu0 0.0
    %732 = vmatprep.subr.mxu0 0.0
    %733 = vmatpush1.msra.mxu0 0.0
    %734 = vmatprep.subr.mxu0 0.0
    %735 = vmatpush1.msra.mxu0 0.0
    %736 = vmatprep.subr.mxu0 0.0
    %737 = vmatpush1.msra.mxu0 0.0
    %738 = vmatprep.subr.mxu0 0.0
    %739 = vmatpush1.msra.mxu0 0.0
    %740 = vmatprep.subr.mxu0 0.0
    %741 = vmatpush1.msra.mxu0 0.0
    %742 = vmatprep.subr.mxu0 0.0
    %743 = vmatpush1.msra.mxu0 0.0
    %744 = vmatprep.subr.mxu0 0.0
    %745 = vmatpush1.msra.mxu0 0.0
    %746 = vmatprep.subr.mxu0 0.0
    %747 = vmatpush1.msra.mxu0 0.0
    %748 = vmatprep.subr.mxu0 0.0
    %749 = vmatpush1.msra.mxu0 0.0
    %750 = vmatprep.mubr.f32.mxu0 0.0
    %751 = vmatmul.mubr.f32.gmra.mrb[0].mxu0 %v675
    %v752 = vpop.f32.mrb[0].mxu0
    %v753 = vadd.f32 %v671, %v752
    %v754 = vpop.f32.mrb[0].mxu0
    %755 = vmatprep.mubr.f32.mxu0 0.0
    %756 = vmatmul.mubr.f32.gmra.mrb[0].mxu0 %v678
    %v757 = vpop.f32.mrb[0].mxu0
    %v758 = vadd.f32 %v671, %v757
    %v759 = vpop.f32.mrb[0].mxu0
    %760 = vmatprep.mubr.f32.mxu0 0.0
    %761 = vmatmul.mubr.f32.gmra.mrb[0].mxu0 %v681
    %v762 = vpop.f32.mrb[0].mxu0
    %v763 = vadd.f32 %v671, %v762
    %v764 = vpop.f32.mrb[0].mxu0
    %765 = vmatprep.mubr.f32.mxu0 0.0
    %766 = vmatmul.mubr.f32.gmra.mrb[0].mxu0 %v684
    %v767 = vpop.f32.mrb[0].mxu0
    %v768 = vadd.f32 %v671, %v767
    %v769 = vpop.f32.mrb[0].mxu0
    %770 = vdwg.mxu0
    %771 = vst [vmem:[#allocation17] sm:$0xff] %v753
    %772 = vst [vmem:[#allocation17 + $0x8] sm:$0xff] %v758
    %773 = vst [vmem:[#allocation17 + $0x10] sm:$0xff] %v763
    %774 = vst [vmem:[#allocation17 + $0x18] sm:$0xff] %v768
    %v775 = vld [vmem:[%s11] sm:$0xff]
    %v776 = vld [vmem:[%s11 + $0x8] sm:$0xff]
    %v777 = vld [vmem:[%s11 + $0x10] sm:$0xff]
    %v778 = vld [vmem:[%s11 + $0x18] sm:$0xff]
    %v779 = vld [vmem:[%s11 + $0x20] sm:$0xff]
    %v780 = vld [vmem:[%s11 + $0x28] sm:$0xff]
    %v781 = vld [vmem:[%s11 + $0x30] sm:$0xff]
    %v782 = vld [vmem:[%s11 + $0x38] sm:$0xff]
    %v783 = vld [vmem:[%s11 + $0x40] sm:$0xff]
    %v784 = vld [vmem:[%s11 + $0x48] sm:$0xff]
    %v785 = vld [vmem:[%s11 + $0x50] sm:$0xff]
    %v786 = vld [vmem:[%s11 + $0x58] sm:$0xff]
    %v787 = vld [vmem:[%s11 + $0x60] sm:$0xff]
    %v788 = vld [vmem:[%s11 + $0x68] sm:$0xff]
    %v789 = vld [vmem:[%s11 + $0x70] sm:$0xff]
    %v790 = vld [vmem:[%s11 + $0x78] sm:$0xff]
    %v791 = vld [vmem:[%s12] sm:$0x1]
    %v793 = vlaneseq
    %v794 = vshrl.u32 %v793, 7
    %v795 = vsub.s32 0, %v794
    %v796 = vrot.slane %v791, %v795
    %798 = vmatprep.subr.mxu0 0.0
    %799 = vmatpush1.msra.mxu0 %v775
    %800 = vmatprep.subr.mxu0 0.0
    %801 = vmatpush1.msra.mxu0 %v776
    %802 = vmatprep.subr.mxu0 0.0
    %803 = vmatpush1.msra.mxu0 %v777
    %804 = vmatprep.subr.mxu0 0.0
    %805 = vmatpush1.msra.mxu0 %v778
    %806 = vmatprep.subr.mxu0 0.0
    %807 = vmatpush1.msra.mxu0 %v779
    %808 = vmatprep.subr.mxu0 0.0
    %809 = vmatpush1.msra.mxu0 %v780
    %810 = vmatprep.subr.mxu0 0.0
    %811 = vmatpush1.msra.mxu0 %v781
    %812 = vmatprep.subr.mxu0 0.0
    %813 = vmatpush1.msra.mxu0 %v782
    %814 = vmatprep.subr.mxu0 0.0
    %815 = vmatpush1.msra.mxu0 %v783
    %816 = vmatprep.subr.mxu0 0.0
    %817 = vmatpush1.msra.mxu0 %v784
    %818 = vmatprep.subr.mxu0 0.0
    %819 = vmatpush1.msra.mxu0 %v785
    %820 = vmatprep.subr.mxu0 0.0
    %821 = vmatpush1.msra.mxu0 %v786
    %822 = vmatprep.subr.mxu0 0.0
    %823 = vmatpush1.msra.mxu0 %v787
    %824 = vmatprep.subr.mxu0 0.0
    %825 = vmatpush1.msra.mxu0 %v788
    %826 = vmatprep.subr.mxu0 0.0
    %827 = vmatpush1.msra.mxu0 %v789
    %828 = vmatprep.subr.mxu0 0.0
    %829 = vmatpush1.msra.mxu0 %v790
    %830 = vmatprep.subr.mxu0 0.0
    %831 = vmatpush1.msra.mxu0 0.0
    %832 = vmatprep.subr.mxu0 0.0
    %833 = vmatpush1.msra.mxu0 0.0
    %834 = vmatprep.subr.mxu0 0.0
    %835 = vmatpush1.msra.mxu0 0.0
    %836 = vmatprep.subr.mxu0 0.0
    %837 = vmatpush1.msra.mxu0 0.0
    %838 = vmatprep.subr.mxu0 0.0
    %839 = vmatpush1.msra.mxu0 0.0
    %840 = vmatprep.subr.mxu0 0.0
    %841 = vmatpush1.msra.mxu0 0.0
    %842 = vmatprep.subr.mxu0 0.0
    %843 = vmatpush1.msra.mxu0 0.0
    %844 = vmatprep.subr.mxu0 0.0
    %845 = vmatpush1.msra.mxu0 0.0
    %846 = vmatprep.subr.mxu0 0.0
    %847 = vmatpush1.msra.mxu0 0.0
    %848 = vmatprep.subr.mxu0 0.0
    %849 = vmatpush1.msra.mxu0 0.0
    %850 = vmatprep.subr.mxu0 0.0
    %851 = vmatpush1.msra.mxu0 0.0
    %852 = vmatprep.subr.mxu0 0.0
    %853 = vmatpush1.msra.mxu0 0.0
    %854 = vmatprep.subr.mxu0 0.0
    %855 = vmatpush1.msra.mxu0 0.0
    %856 = vmatprep.subr.mxu0 0.0
    %857 = vmatpush1.msra.mxu0 0.0
    %858 = vmatprep.subr.mxu0 0.0
    %859 = vmatpush1.msra.mxu0 0.0
    %860 = vmatprep.subr.mxu0 0.0
    %861 = vmatpush1.msra.mxu0 0.0
    %862 = vmatprep.mubr.f32.mxu0 0.0
    %863 = vmatmul.mubr.f32.gmra.mrb[0].mxu0 %v753
    %v864 = vpop.f32.mrb[0].mxu0
    %v865 = vadd.f32 %v796, %v864
    %v866 = vpop.f32.mrb[0].mxu0
    %867 = vmatprep.mubr.f32.mxu0 0.0
    %868 = vmatmul.mubr.f32.gmra.mrb[0].mxu0 %v758
    %v869 = vpop.f32.mrb[0].mxu0
    %v870 = vadd.f32 %v796, %v869
    %v871 = vpop.f32.mrb[0].mxu0
    %872 = vmatprep.mubr.f32.mxu0 0.0
    %873 = vmatmul.mubr.f32.gmra.mrb[0].mxu0 %v763
    %v874 = vpop.f32.mrb[0].mxu0
    %v875 = vadd.f32 %v796, %v874
    %v876 = vpop.f32.mrb[0].mxu0
    %877 = vmatprep.mubr.f32.mxu0 0.0
    %878 = vmatmul.mubr.f32.gmra.mrb[0].mxu0 %v768
    %v879 = vpop.f32.mrb[0].mxu0
    %v880 = vadd.f32 %v796, %v879
    %v881 = vpop.f32.mrb[0].mxu0
    %882 = vdwg.mxu0
    %v883 = vmax.f32 %v865, 0.0
    %v884 = vmax.f32 %v870, 0.0
    %v885 = vmax.f32 %v875, 0.0
    %v886 = vmax.f32 %v880, 0.0
    %v887 = vld [vmem:[#allocation13] sm:$0xff]
    %v888 = vld [vmem:[#allocation13 + $0x8] sm:$0xff]
    %v889 = vld [vmem:[%s14] sm:$0x1]
    %v891 = vlaneseq
    %v892 = vshrl.u32 %v891, 7
    %v893 = vsub.s32 0, %v892
    %v894 = vrot.slane %v889, %v893
    %v897 = vsel %vm673, %v883, 0
    %v900 = vsel %vm673, %v884, 0
    %v903 = vsel %vm673, %v885, 0
    %v906 = vsel %vm673, %v886, 0
    %908 = vmatprep.subr.mxu0 0.0
    %909 = vmatpush1.msra.mxu0 %v887
    %910 = vmatprep.subr.mxu0 0.0
    %911 = vmatpush1.msra.mxu0 %v888
    %912 = vmatprep.subr.mxu0 0.0
    %913 = vmatpush1.msra.mxu0 0.0
    %914 = vmatprep.subr.mxu0 0.0
    %915 = vmatpush1.msra.mxu0 0.0
    %916 = vmatprep.subr.mxu0 0.0
    %917 = vmatpush1.msra.mxu0 0.0
    %918 = vmatprep.subr.mxu0 0.0
    %919 = vmatpush1.msra.mxu0 0.0
    %920 = vmatprep.subr.mxu0 0.0
    %921 = vmatpush1.msra.mxu0 0.0
    %922 = vmatprep.subr.mxu0 0.0
    %923 = vmatpush1.msra.mxu0 0.0
    %924 = vmatprep.subr.mxu0 0.0
    %925 = vmatpush1.msra.mxu0 0.0
    %926 = vmatprep.subr.mxu0 0.0
    %927 = vmatpush1.msra.mxu0 0.0
    %928 = vmatprep.subr.mxu0 0.0
    %929 = vmatpush1.msra.mxu0 0.0
    %930 = vmatprep.subr.mxu0 0.0
    %931 = vmatpush1.msra.mxu0 0.0
    %932 = vmatprep.subr.mxu0 0.0
    %933 = vmatpush1.msra.mxu0 0.0
    %934 = vmatprep.subr.mxu0 0.0
    %935 = vmatpush1.msra.mxu0 0.0
    %936 = vmatprep.subr.mxu0 0.0
    %937 = vmatpush1.msra.mxu0 0.0
    %938 = vmatprep.subr.mxu0 0.0
    %939 = vmatpush1.msra.mxu0 0.0
    %940 = vmatprep.subr.mxu0 0.0
    %941 = vmatpush1.msra.mxu0 0.0
    %942 = vmatprep.subr.mxu0 0.0
    %943 = vmatpush1.msra.mxu0 0.0
    %944 = vmatprep.subr.mxu0 0.0
    %945 = vmatpush1.msra.mxu0 0.0
    %946 = vmatprep.subr.mxu0 0.0
    %947 = vmatpush1.msra.mxu0 0.0
    %948 = vmatprep.subr.mxu0 0.0
    %949 = vmatpush1.msra.mxu0 0.0
    %950 = vmatprep.subr.mxu0 0.0
    %951 = vmatpush1.msra.mxu0 0.0
    %952 = vmatprep.subr.mxu0 0.0
    %953 = vmatpush1.msra.mxu0 0.0
    %954 = vmatprep.subr.mxu0 0.0
    %955 = vmatpush1.msra.mxu0 0.0
    %956 = vmatprep.subr.mxu0 0.0
    %957 = vmatpush1.msra.mxu0 0.0
    %958 = vmatprep.subr.mxu0 0.0
    %959 = vmatpush1.msra.mxu0 0.0
    %960 = vmatprep.subr.mxu0 0.0
    %961 = vmatpush1.msra.mxu0 0.0
    %962 = vmatprep.subr.mxu0 0.0
    %963 = vmatpush1.msra.mxu0 0.0
    %964 = vmatprep.subr.mxu0 0.0
    %965 = vmatpush1.msra.mxu0 0.0
    %966 = vmatprep.subr.mxu0 0.0
    %967 = vmatpush1.msra.mxu0 0.0
    %968 = vmatprep.subr.mxu0 0.0
    %969 = vmatpush1.msra.mxu0 0.0
    %970 = vmatprep.subr.mxu0 0.0
    %971 = vmatpush1.msra.mxu0 0.0
    %972 = vmatprep.mubr.f32.mxu0 0.0
    %973 = vmatmul.mubr.f32.gmra.mrb[0].mxu0 %v897
    %v974 = vpop.f32.mrb[0].mxu0
    %v975 = vadd.f32 %v894, %v974
    %v976 = vpop.f32.mrb[0].mxu0
    %977 = vmatprep.mubr.f32.mxu0 0.0
    %978 = vmatmul.mubr.f32.gmra.mrb[0].mxu0 %v900
    %v979 = vpop.f32.mrb[0].mxu0
    %v980 = vadd.f32 %v894, %v979
    %v981 = vpop.f32.mrb[0].mxu0
    %982 = vmatprep.mubr.f32.mxu0 0.0
    %983 = vmatmul.mubr.f32.gmra.mrb[0].mxu0 %v903
    %v984 = vpop.f32.mrb[0].mxu0
    %v985 = vadd.f32 %v894, %v984
    %v986 = vpop.f32.mrb[0].mxu0
    %987 = vmatprep.mubr.f32.mxu0 0.0
    %988 = vmatmul.mubr.f32.gmra.mrb[0].mxu0 %v906
    %v989 = vpop.f32.mrb[0].mxu0
    %v990 = vadd.f32 %v894, %v989
    %v991 = vpop.f32.mrb[0].mxu0
    %992 = vdwg.mxu0
    %v993 = vmax.f32 %v975, 0.0
    %v994 = vmax.f32 %v980, 0.0
    %v995 = vmax.f32 %v985, 0.0
    %v996 = vmax.f32 %v990, 0.0
    %v997 = vld [vmem:[#allocation14] sm:$0xff]
    %v998 = vld [vmem:[#allocation14 + $0x8] sm:$0xff]
    %v999 = vld [vmem:[#allocation14 + $0x10] sm:$0xff]
    %v1000 = vld [vmem:[#allocation14 + $0x18] sm:$0xff]
    %v1001 = vld [vmem:[%s16] sm:$0x1]
    %v1003 = vlaneseq
    %v1004 = vshrl.u32 %v1003, 7
    %v1005 = vsub.s32 0, %v1004
    %v1006 = vrot.slane %v1001, %v1005
    %v1009 = vsel %vm562, %v993, 0
    %v1012 = vsel %vm562, %v994, 0
    %v1015 = vsel %vm562, %v995, 0
    %v1018 = vsel %vm562, %v996, 0
    %1020 = vmatprep.subr.mxu0 0.0
    %1021 = vmatpush1.msra.mxu0 %v997
    %1022 = vmatprep.subr.mxu0 0.0
    %1023 = vmatpush1.msra.mxu0 %v998
    %1024 = vmatprep.subr.mxu0 0.0
    %1025 = vmatpush1.msra.mxu0 %v999
    %1026 = vmatprep.subr.mxu0 0.0
    %1027 = vmatpush1.msra.mxu0 %v1000
    %1028 = vmatprep.subr.mxu0 0.0
    %1029 = vmatpush1.msra.mxu0 0.0
    %1030 = vmatprep.subr.mxu0 0.0
    %1031 = vmatpush1.msra.mxu0 0.0
    %1032 = vmatprep.subr.mxu0 0.0
    %1033 = vmatpush1.msra.mxu0 0.0
    %1034 = vmatprep.subr.mxu0 0.0
    %1035 = vmatpush1.msra.mxu0 0.0
    %1036 = vmatprep.subr.mxu0 0.0
    %1037 = vmatpush1.msra.mxu0 0.0
    %1038 = vmatprep.subr.mxu0 0.0
    %1039 = vmatpush1.msra.mxu0 0.0
    %1040 = vmatprep.subr.mxu0 0.0
    %1041 = vmatpush1.msra.mxu0 0.0
    %1042 = vmatprep.subr.mxu0 0.0
    %1043 = vmatpush1.msra.mxu0 0.0
    %1044 = vmatprep.subr.mxu0 0.0
    %1045 = vmatpush1.msra.mxu0 0.0
    %1046 = vmatprep.subr.mxu0 0.0
    %1047 = vmatpush1.msra.mxu0 0.0
    %1048 = vmatprep.subr.mxu0 0.0
    %1049 = vmatpush1.msra.mxu0 0.0
    %1050 = vmatprep.subr.mxu0 0.0
    %1051 = vmatpush1.msra.mxu0 0.0
    %1052 = vmatprep.subr.mxu0 0.0
    %1053 = vmatpush1.msra.mxu0 0.0
    %1054 = vmatprep.subr.mxu0 0.0
    %1055 = vmatpush1.msra.mxu0 0.0
    %1056 = vmatprep.subr.mxu0 0.0
    %1057 = vmatpush1.msra.mxu0 0.0
    %1058 = vmatprep.subr.mxu0 0.0
    %1059 = vmatpush1.msra.mxu0 0.0
    %1060 = vmatprep.subr.mxu0 0.0
    %1061 = vmatpush1.msra.mxu0 0.0
    %1062 = vmatprep.subr.mxu0 0.0
    %1063 = vmatpush1.msra.mxu0 0.0
    %1064 = vmatprep.subr.mxu0 0.0
    %1065 = vmatpush1.msra.mxu0 0.0
    %1066 = vmatprep.subr.mxu0 0.0
    %1067 = vmatpush1.msra.mxu0 0.0
    %1068 = vmatprep.subr.mxu0 0.0
    %1069 = vmatpush1.msra.mxu0 0.0
    %1070 = vmatprep.subr.mxu0 0.0
    %1071 = vmatpush1.msra.mxu0 0.0
    %1072 = vmatprep.subr.mxu0 0.0
    %1073 = vmatpush1.msra.mxu0 0.0
    %1074 = vmatprep.subr.mxu0 0.0
    %1075 = vmatpush1.msra.mxu0 0.0
    %1076 = vmatprep.subr.mxu0 0.0
    %1077 = vmatpush1.msra.mxu0 0.0
    %1078 = vmatprep.subr.mxu0 0.0
    %1079 = vmatpush1.msra.mxu0 0.0
    %1080 = vmatprep.subr.mxu0 0.0
    %1081 = vmatpush1.msra.mxu0 0.0
    %1082 = vmatprep.subr.mxu0 0.0
    %1083 = vmatpush1.msra.mxu0 0.0
    %1084 = vmatprep.mubr.f32.mxu0 0.0
    %1085 = vmatmul.mubr.f32.gmra.mrb[0].mxu0 %v1009
    %v1086 = vpop.f32.mrb[0].mxu0
    %v1087 = vadd.f32 %v1006, %v1086
    %v1088 = vpop.f32.mrb[0].mxu0
    %1089 = vmatprep.mubr.f32.mxu0 0.0
    %1090 = vmatmul.mubr.f32.gmra.mrb[0].mxu0 %v1012
    %v1091 = vpop.f32.mrb[0].mxu0
    %v1092 = vadd.f32 %v1006, %v1091
    %v1093 = vpop.f32.mrb[0].mxu0
    %1094 = vmatprep.mubr.f32.mxu0 0.0
    %1095 = vmatmul.mubr.f32.gmra.mrb[0].mxu0 %v1015
    %v1096 = vpop.f32.mrb[0].mxu0
    %v1097 = vadd.f32 %v1006, %v1096
    %v1098 = vpop.f32.mrb[0].mxu0
    %1099 = vmatprep.mubr.f32.mxu0 0.0
    %1100 = vmatmul.mubr.f32.gmra.mrb[0].mxu0 %v1018
    %v1101 = vpop.f32.mrb[0].mxu0
    %v1102 = vadd.f32 %v1006, %v1101
    %v1103 = vpop.f32.mrb[0].mxu0
    %1104 = vdwg.mxu0
    %v1105 = vmax.f32 %v1087, 0.0
    %v1106 = vmax.f32 %v1092, 0.0
    %v1107 = vmax.f32 %v1097, 0.0
    %v1108 = vmax.f32 %v1102, 0.0
    %v1109 = vld [vmem:[#allocation16] sm:$0xff]
    %v1110 = vld [vmem:[#allocation16 + $0x8] sm:$0xff]
    %v1111 = vld [vmem:[#allocation16 + $0x10] sm:$0xff]
    %v1112 = vld [vmem:[#allocation16 + $0x18] sm:$0xff]
    %v1113 = vld [vmem:[#allocation16 + $0x20] sm:$0xff]
    %v1114 = vld [vmem:[#allocation16 + $0x28] sm:$0xff]
    %v1115 = vld [vmem:[#allocation16 + $0x30] sm:$0xff]
    %v1116 = vld [vmem:[#allocation16 + $0x38] sm:$0xff]
    %v1117 = vld [vmem:[%s18] sm:$0x1]
    %v1119 = vlaneseq
    %v1120 = vshrl.u32 %v1119, 7
    %v1121 = vsub.s32 0, %v1120
    %v1122 = vrot.slane %v1117, %v1121
    %v1125 = vsel %vm449, %v1105, 0
    %v1128 = vsel %vm449, %v1106, 0
    %v1131 = vsel %vm449, %v1107, 0
    %v1134 = vsel %vm449, %v1108, 0
    %1136 = vmatprep.subr.mxu0 0.0
    %1137 = vmatpush1.msra.mxu0 %v1109
    %1138 = vmatprep.subr.mxu0 0.0
    %1139 = vmatpush1.msra.mxu0 %v1110
    %1140 = vmatprep.subr.mxu0 0.0
    %1141 = vmatpush1.msra.mxu0 %v1111
    %1142 = vmatprep.subr.mxu0 0.0
    %1143 = vmatpush1.msra.mxu0 %v1112
    %1144 = vmatprep.subr.mxu0 0.0
    %1145 = vmatpush1.msra.mxu0 %v1113
    %1146 = vmatprep.subr.mxu0 0.0
    %1147 = vmatpush1.msra.mxu0 %v1114
    %1148 = vmatprep.subr.mxu0 0.0
    %1149 = vmatpush1.msra.mxu0 %v1115
    %1150 = vmatprep.subr.mxu0 0.0
    %1151 = vmatpush1.msra.mxu0 %v1116
    %1152 = vmatprep.subr.mxu0 0.0
    %1153 = vmatpush1.msra.mxu0 0.0
    %1154 = vmatprep.subr.mxu0 0.0
    %1155 = vmatpush1.msra.mxu0 0.0
    %1156 = vmatprep.subr.mxu0 0.0
    %1157 = vmatpush1.msra.mxu0 0.0
    %1158 = vmatprep.subr.mxu0 0.0
    %1159 = vmatpush1.msra.mxu0 0.0
    %1160 = vmatprep.subr.mxu0 0.0
    %1161 = vmatpush1.msra.mxu0 0.0
    %1162 = vmatprep.subr.mxu0 0.0
    %1163 = vmatpush1.msra.mxu0 0.0
    %1164 = vmatprep.subr.mxu0 0.0
    %1165 = vmatpush1.msra.mxu0 0.0
    %1166 = vmatprep.subr.mxu0 0.0
    %1167 = vmatpush1.msra.mxu0 0.0
    %1168 = vmatprep.subr.mxu0 0.0
    %1169 = vmatpush1.msra.mxu0 0.0
    %1170 = vmatprep.subr.mxu0 0.0
    %1171 = vmatpush1.msra.mxu0 0.0
    %1172 = vmatprep.subr.mxu0 0.0
    %1173 = vmatpush1.msra.mxu0 0.0
    %1174 = vmatprep.subr.mxu0 0.0
    %1175 = vmatpush1.msra.mxu0 0.0
    %1176 = vmatprep.subr.mxu0 0.0
    %1177 = vmatpush1.msra.mxu0 0.0
    %1178 = vmatprep.subr.mxu0 0.0
    %1179 = vmatpush1.msra.mxu0 0.0
    %1180 = vmatprep.subr.mxu0 0.0
    %1181 = vmatpush1.msra.mxu0 0.0
    %1182 = vmatprep.subr.mxu0 0.0
    %1183 = vmatpush1.msra.mxu0 0.0
    %1184 = vmatprep.subr.mxu0 0.0
    %1185 = vmatpush1.msra.mxu0 0.0
    %1186 = vmatprep.subr.mxu0 0.0
    %1187 = vmatpush1.msra.mxu0 0.0
    %1188 = vmatprep.subr.mxu0 0.0
    %1189 = vmatpush1.msra.mxu0 0.0
    %1190 = vmatprep.subr.mxu0 0.0
    %1191 = vmatpush1.msra.mxu0 0.0
    %1192 = vmatprep.subr.mxu0 0.0
    %1193 = vmatpush1.msra.mxu0 0.0
    %1194 = vmatprep.subr.mxu0 0.0
    %1195 = vmatpush1.msra.mxu0 0.0
    %1196 = vmatprep.subr.mxu0 0.0
    %1197 = vmatpush1.msra.mxu0 0.0
    %1198 = vmatprep.subr.mxu0 0.0
    %1199 = vmatpush1.msra.mxu0 0.0
    %1200 = vmatprep.mubr.f32.mxu0 0.0
    %1201 = vmatmul.mubr.f32.gmra.mrb[0].mxu0 %v1125
    %v1202 = vpop.f32.mrb[0].mxu0
    %v1203 = vadd.f32 %v1122, %v1202
    %v1204 = vpop.f32.mrb[0].mxu0
    %1205 = vmatprep.mubr.f32.mxu0 0.0
    %1206 = vmatmul.mubr.f32.gmra.mrb[0].mxu0 %v1128
    %v1207 = vpop.f32.mrb[0].mxu0
    %v1208 = vadd.f32 %v1122, %v1207
    %v1209 = vpop.f32.mrb[0].mxu0
    %1210 = vmatprep.mubr.f32.mxu0 0.0
    %1211 = vmatmul.mubr.f32.gmra.mrb[0].mxu0 %v1131
    %v1212 = vpop.f32.mrb[0].mxu0
    %v1213 = vadd.f32 %v1122, %v1212
    %v1214 = vpop.f32.mrb[0].mxu0
    %1215 = vmatprep.mubr.f32.mxu0 0.0
    %1216 = vmatmul.mubr.f32.gmra.mrb[0].mxu0 %v1134
    %v1217 = vpop.f32.mrb[0].mxu0
    %v1218 = vadd.f32 %v1122, %v1217
    %v1219 = vpop.f32.mrb[0].mxu0
    %1220 = vdwg.mxu0
    %v1221 = vmax.f32 %v1203, 0.0
    %v1222 = vmax.f32 %v1208, 0.0
    %v1223 = vmax.f32 %v1213, 0.0
    %v1224 = vmax.f32 %v1218, 0.0
    %v1225 = vld [vmem:[%s19] sm:$0xff]
    %v1226 = vld [vmem:[%s19 + $0x8] sm:$0xff]
    %v1227 = vld [vmem:[%s19 + $0x10] sm:$0xff]
    %v1228 = vld [vmem:[%s19 + $0x18] sm:$0xff]
    %v1229 = vld [vmem:[%s19 + $0x20] sm:$0xff]
    %v1230 = vld [vmem:[%s19 + $0x28] sm:$0xff]
    %v1231 = vld [vmem:[%s19 + $0x30] sm:$0xff]
    %v1232 = vld [vmem:[%s19 + $0x38] sm:$0xff]
    %v1233 = vld [vmem:[%s19 + $0x40] sm:$0xff]
    %v1234 = vld [vmem:[%s19 + $0x48] sm:$0xff]
    %v1235 = vld [vmem:[%s19 + $0x50] sm:$0xff]
    %v1236 = vld [vmem:[%s19 + $0x58] sm:$0xff]
    %v1237 = vld [vmem:[%s19 + $0x60] sm:$0xff]
    %v1238 = vld [vmem:[%s19 + $0x68] sm:$0xff]
    %v1239 = vld [vmem:[%s19 + $0x70] sm:$0xff]
    %v1240 = vld [vmem:[%s19 + $0x78] sm:$0xff]
    %v1241 = vld [vmem:[%s19 + $0x80] sm:$0xff]
    %v1242 = vld [vmem:[%s19 + $0x88] sm:$0xff]
    %v1243 = vld [vmem:[%s19 + $0x90] sm:$0xff]
    %v1244 = vld [vmem:[%s19 + $0x98] sm:$0xff]
    %v1245 = vld [vmem:[%s19 + $0xa0] sm:$0xff]
    %v1246 = vld [vmem:[%s19 + $0xa8] sm:$0xff]
    %v1247 = vld [vmem:[%s19 + $0xb0] sm:$0xff]
    %v1248 = vld [vmem:[%s19 + $0xb8] sm:$0xff]
    %v1249 = vld [vmem:[%s19 + $0xc0] sm:$0xff]
    %v1250 = vld [vmem:[%s19 + $0xc8] sm:$0xff]
    %v1251 = vld [vmem:[%s19 + $0xd0] sm:$0xff]
    %v1252 = vld [vmem:[%s19 + $0xd8] sm:$0xff]
    %v1253 = vld [vmem:[%s19 + $0xe0] sm:$0xff]
    %v1254 = vld [vmem:[%s19 + $0xe8] sm:$0xff]
    %v1255 = vld [vmem:[%s19 + $0xf0] sm:$0xff]
    %v1256 = vld [vmem:[%s19 + $0xf8] sm:$0xff]
    %v1257 = vld [vmem:[%s20] sm:$0x3]
    %v1259 = vlaneseq
    %v1260 = vshrl.u32 %v1259, 7
    %v1261 = vsub.s32 0, %v1260
    %v1262 = vrot.slane %v1257, %v1261
    %v1263 = vlaneseq
    %v1264 = vshrl.u32 %v1263, 7
    %v1265 = vsub.s32 1, %v1264
    %v1266 = vrot.slane %v1257, %v1265
    %1269 = vmatprep.subr.mxu0 %v1226
    %1270 = vmatpush1.msra.mxu0 %v1225
    %1271 = vmatprep.subr.mxu0 %v1228
    %1272 = vmatpush1.msra.mxu0 %v1227
    %1273 = vmatprep.subr.mxu0 %v1230
    %1274 = vmatpush1.msra.mxu0 %v1229
    %1275 = vmatprep.subr.mxu0 %v1232
    %1276 = vmatpush1.msra.mxu0 %v1231
    %1277 = vmatprep.subr.mxu0 %v1234
    %1278 = vmatpush1.msra.mxu0 %v1233
    %1279 = vmatprep.subr.mxu0 %v1236
    %1280 = vmatpush1.msra.mxu0 %v1235
    %1281 = vmatprep.subr.mxu0 %v1238
    %1282 = vmatpush1.msra.mxu0 %v1237
    %1283 = vmatprep.subr.mxu0 %v1240
    %1284 = vmatpush1.msra.mxu0 %v1239
    %1285 = vmatprep.subr.mxu0 %v1242
    %1286 = vmatpush1.msra.mxu0 %v1241
    %1287 = vmatprep.subr.mxu0 %v1244
    %1288 = vmatpush1.msra.mxu0 %v1243
    %1289 = vmatprep.subr.mxu0 %v1246
    %1290 = vmatpush1.msra.mxu0 %v1245
    %1291 = vmatprep.subr.mxu0 %v1248
    %1292 = vmatpush1.msra.mxu0 %v1247
    %1293 = vmatprep.subr.mxu0 %v1250
    %1294 = vmatpush1.msra.mxu0 %v1249
    %1295 = vmatprep.subr.mxu0 %v1252
    %1296 = vmatpush1.msra.mxu0 %v1251
    %1297 = vmatprep.subr.mxu0 %v1254
    %1298 = vmatpush1.msra.mxu0 %v1253
    %1299 = vmatprep.subr.mxu0 %v1256
    %1300 = vmatpush1.msra.mxu0 %v1255
    %1301 = vmatprep.subr.mxu0 0.0
    %1302 = vmatpush1.msra.mxu0 0.0
    %1303 = vmatprep.subr.mxu0 0.0
    %1304 = vmatpush1.msra.mxu0 0.0
    %1305 = vmatprep.subr.mxu0 0.0
    %1306 = vmatpush1.msra.mxu0 0.0
    %1307 = vmatprep.subr.mxu0 0.0
    %1308 = vmatpush1.msra.mxu0 0.0
    %1309 = vmatprep.subr.mxu0 0.0
    %1310 = vmatpush1.msra.mxu0 0.0
    %1311 = vmatprep.subr.mxu0 0.0
    %1312 = vmatpush1.msra.mxu0 0.0
    %1313 = vmatprep.subr.mxu0 0.0
    %1314 = vmatpush1.msra.mxu0 0.0
    %1315 = vmatprep.subr.mxu0 0.0
    %1316 = vmatpush1.msra.mxu0 0.0
    %1317 = vmatprep.subr.mxu0 0.0
    %1318 = vmatpush1.msra.mxu0 0.0
    %1319 = vmatprep.subr.mxu0 0.0
    %1320 = vmatpush1.msra.mxu0 0.0
    %1321 = vmatprep.subr.mxu0 0.0
    %1322 = vmatpush1.msra.mxu0 0.0
    %1323 = vmatprep.subr.mxu0 0.0
    %1324 = vmatpush1.msra.mxu0 0.0
    %1325 = vmatprep.subr.mxu0 0.0
    %1326 = vmatpush1.msra.mxu0 0.0
    %1327 = vmatprep.subr.mxu0 0.0
    %1328 = vmatpush1.msra.mxu0 0.0
    %1329 = vmatprep.subr.mxu0 0.0
    %1330 = vmatpush1.msra.mxu0 0.0
    %1331 = vmatprep.subr.mxu0 0.0
    %1332 = vmatpush1.msra.mxu0 0.0
    %1333 = vmatprep.mubr.f32.mxu0 0.0
    %1334 = vmatmul.mubr.f32.gmra.mrb[0].mxu0 %v1221
    %v1335 = vpop.f32.mrb[0].mxu0
    %v1336 = vadd.f32 %v1262, %v1335
    %v1337 = vpop.f32.mrb[0].mxu0
    %v1338 = vadd.f32 %v1266, %v1337
    %1339 = vmatprep.mubr.f32.mxu0 0.0
    %1340 = vmatmul.mubr.f32.gmra.mrb[0].mxu0 %v1222
    %v1341 = vpop.f32.mrb[0].mxu0
    %v1342 = vadd.f32 %v1262, %v1341
    %v1343 = vpop.f32.mrb[0].mxu0
    %v1344 = vadd.f32 %v1266, %v1343
    %1345 = vmatprep.mubr.f32.mxu0 0.0
    %1346 = vmatmul.mubr.f32.gmra.mrb[0].mxu0 %v1223
    %v1347 = vpop.f32.mrb[0].mxu0
    %v1348 = vadd.f32 %v1262, %v1347
    %v1349 = vpop.f32.mrb[0].mxu0
    %v1350 = vadd.f32 %v1266, %v1349
    %1351 = vmatprep.mubr.f32.mxu0 0.0
    %1352 = vmatmul.mubr.f32.gmra.mrb[0].mxu0 %v1224
    %v1353 = vpop.f32.mrb[0].mxu0
    %v1354 = vadd.f32 %v1262, %v1353
    %v1355 = vpop.f32.mrb[0].mxu0
    %v1356 = vadd.f32 %v1266, %v1355
    %1357 = vdwg.mxu0
    %1358 = vst [vmem:[#allocation18] sm:$0xff] %v1336
    %1359 = vst [vmem:[#allocation18 + $0x8] sm:$0xff] %v1338
    %1360 = vst [vmem:[#allocation18 + $0x10] sm:$0xff] %v1342
    %1361 = vst [vmem:[#allocation18 + $0x18] sm:$0xff] %v1344
    %1362 = vst [vmem:[#allocation18 + $0x20] sm:$0xff] %v1348
    %1363 = vst [vmem:[#allocation18 + $0x28] sm:$0xff] %v1350
    %1364 = vst [vmem:[#allocation18 + $0x30] sm:$0xff] %v1354
    %1365 = vst [vmem:[#allocation18 + $0x38] sm:$0xff] %v1356
    // Predicated region
    $region122: #{tpu_custom_call.1} parent=1 // pred_check
      _
    $region123: #{tpu_custom_call.1} parent=1 // pred_check_branch
      %1367 = sbr.rel (0) target = $region125
    $region124: #{tpu_custom_call.1} parent=1 // pred_region
      %s1369 = ssub.s32 512, 512
      %1370 = vsyncadd [#allocation4], %s1369
      %s1371 = sshll.u32 [#allocation17], 4
      %s1372 = int_to_ptr.vmem [resolvable:$true] %s1371
      %1377 = dma.vmem_to_hbm [thread:$0]  %s1372, 512, %s21, [#allocation4], 128, 128, 8
    $region125: #{tpu_custom_call.1} parent=1 // pred_fallthru
      _
    // Predicated region
    $region126: #{tpu_custom_call.1} parent=1 // pred_check
      _
    $region127: #{tpu_custom_call.1} parent=1 // pred_check_branch
      %1379 = sbr.rel (0) target = $region129
    $region128: #{tpu_custom_call.1} parent=1 // pred_region
      %s1381 = ssub.s32 1024, 1024
      %1382 = vsyncadd [#allocation19], %s1381
      %s1383 = sshll.u32 [#allocation18], 4
      %s1384 = int_to_ptr.vmem [resolvable:$true] %s1383
      %1389 = dma.vmem_to_hbm [thread:$0]  %s1384, 1024, %s22, [#allocation19], 256, 256, 16
    $region129: #{tpu_custom_call.1} parent=1 // pred_fallthru
      _
    // Predicated region
    $region130: #{tpu_custom_call.1} parent=1 // pred_check
      _
    $region131: #{tpu_custom_call.1} parent=1 // pred_check_branch
      %1391 = sbr.rel (0) target = $region133
    $region132: #{tpu_custom_call.1} parent=1 // pred_region
      %1392 = dma.done [#allocation4], 512
    $region133: #{tpu_custom_call.1} parent=1 // pred_fallthru
      _
    // Predicated region
    $region134: #{tpu_custom_call.1} parent=1 // pred_check
      _
    $region135: #{tpu_custom_call.1} parent=1 // pred_check_branch
      %1394 = sbr.rel (0) target = $region137
    $region136: #{tpu_custom_call.1} parent=1 // pred_region
      %1395 = dma.done [#allocation19], 1024
    $region137: #{tpu_custom_call.1} parent=1 // pred_fallthru
      _
    %1396 = vsyncpa [#allocation3], 1
    %1397 = vsyncpa [#allocation6], 1
    %1398 = vsyncpa [#allocation9], 1
    %1399 = vsyncpa [#allocation12], 1
    %1400 = vsyncpa [#allocation15], 1
    %1401 = vsyncpa [#allocation4], 1
    %1402 = vsyncpa [#allocation19], 1

</llo_original>
